<compile_context>
chip_gen: v7x
topology: tpu7x:2x2x1
jax: 0.10.0
libtpu: 0.0.40
codegen_flags: <defaults>
</compile_context>

<pallas_src>
import jax
import jax.numpy as jnp
from jax.experimental import pallas as pl
from jax.experimental.pallas import tpu as pltpu

EPS = 1e-5


# ----------------------------- Pallas kernels ------------------------------
def _make_conv3x3_kernel(bn, Wo, stride, relu, residual, id_stride):
    """3x3 conv (input already zero-padded), BN scale folded into the weight.

    grid = (N // bn, Ho, 3).  Last grid axis = filter-row tap dh (reduction);
    the 3 dw taps are unrolled in-kernel.  `residual` is one of
    None | "identity" | "downsample" (fused 1x1-conv + BN shortcut).
    """
    n_w_in = (Wo - 1) * stride + 1
    n_w_id = (Wo - 1) * id_stride + 1

    def kernel(x_ref, w_ref, b_ref, *rest):
        if residual is None:
            o_ref, acc_ref = rest
            xid_ref = wd_ref = bd_ref = None
        elif residual == "identity":
            xid_ref, o_ref, acc_ref = rest
            wd_ref = bd_ref = None
        else:  # "downsample"
            xid_ref, wd_ref, bd_ref, o_ref, acc_ref = rest

        dh = pl.program_id(2)

        @pl.when(dh == 0)
        def _init():
            acc_ref[...] = jnp.zeros_like(acc_ref)

        x_blk = x_ref[...]          # (bn, 1, Wp, Cin)   bf16 (padded input row)
        w_blk = w_ref[...]          # (1, 3, Cin, Cout)  bf16, filter row `dh`
        xband = x_blk[:, 0]         # (bn, Wp, Cin)

        for dw in range(3):
            w_tap = w_blk[0, dw]    # (Cin, Cout)
            for b in range(bn):
                # (Wp, Cin) @ (Cin, Cout) -> f32 (Wp, Cout); the shifted /
                # strided row window of the *result* is this dw-tap's
                # contribution (keeps all slicing on f32, none on packed bf16).
                full = jnp.dot(xband[b], w_tap,
                               preferred_element_type=jnp.float32)
                if stride == 1:
                    tap = full[dw:dw + Wo, :]
                else:
                    tap = jax.lax.slice(full, (dw, 0),
                                        (dw + n_w_in, full.shape[-1]),
                                        (stride, 1))
                acc_ref[b, :, :] += tap

        @pl.when(dh == 2)
        def _finalize():
            bias = b_ref[...]                        # (1, Cout) f32
            if residual is not None:
                xid_all = xid_ref[...]               # (bn, 1, ., .) bf16
            if residual == "downsample":
                wd = wd_ref[...]                     # (Cin, Cout) bf16
                bd = bd_ref[...]                     # (1, Cout)   f32
            for b in range(bn):
                out = acc_ref[b, :, :] + bias        # (Wo, Cout) f32
                if residual == "identity":
                    out = out + xid_all[b, 0].astype(jnp.float32)
                elif residual == "downsample":
                    ident = jnp.dot(xid_all[b, 0], wd,
                                    preferred_element_type=jnp.float32)
                    if id_stride != 1:
                        ident = jax.lax.slice(ident, (0, 0),
                                              (n_w_id, ident.shape[-1]),
                                              (id_stride, 1))
                    out = out + ident + bd
                if relu:
                    out = jnp.maximum(out, 0.0)
                o_ref[b, 0, :, :] = out.astype(o_ref.dtype)

    return kernel


def _pick_batch_tile(n, wo, target_rows=256, max_bn=8):
    """Largest divisor of n (<= max_bn) whose tile (bn*Wo rows) stays modest."""
    bt = 1
    for d in range(1, min(n, max_bn) + 1):
        if n % d == 0 and d * wo <= max(target_rows, wo):
            bt = d
    return bt


def _conv3x3_bn(xp, w, b, *, stride, Ho, Wo, bn, relu,
                residual=None, xid=None, wd=None, bd=None, id_stride=1,
                out_dtype=jnp.float32):
    """One fused pallas_call: 3x3 conv (input pre-padded) + folded-BN bias
    (+ fused residual / 1x1-conv downsample shortcut) (+ ReLU)."""
    N, Hp, Wp, Cin = xp.shape
    Cout = w.shape[-1]
    grid = (N // bn, Ho, 3)

    in_specs = [
        # activation band: one padded input row per (image-tile, ho, dh)
        pl.BlockSpec((bn, 1, Wp, Cin),
                     lambda nb, ho, dh: (nb, ho * stride + dh, 0, 0)),
        # filter row `dh` of the 3x3 kernel (BN scale folded in)
        pl.BlockSpec((1, 3, Cin, Cout), lambda nb, ho, dh: (dh, 0, 0, 0)),
        # folded BN bias
        pl.BlockSpec((1, Cout), lambda nb, ho, dh: (0, 0)),
    ]
    args = [xp, w, b]

    if residual == "identity":
        in_specs.append(pl.BlockSpec((bn, 1, Wo, Cout),
                                     lambda nb, ho, dh: (nb, ho, 0, 0)))
        args.append(xid)
    elif residual == "downsample":
        Wi, Ci = xid.shape[2], xid.shape[3]
        in_specs += [
            pl.BlockSpec((bn, 1, Wi, Ci),
                         lambda nb, ho, dh: (nb, ho * id_stride, 0, 0)),
            pl.BlockSpec((Ci, Cout), lambda nb, ho, dh: (0, 0)),
            pl.BlockSpec((1, Cout), lambda nb, ho, dh: (0, 0)),
        ]
        args += [xid, wd, bd]

    flops = 2 * N * Ho * Wo * 9 * Cin * Cout
    if residual == "downsample":
        flops += 2 * N * Ho * Wo * xid.shape[3] * Cout
    bytes_accessed = sum(int(a.size) * a.dtype.itemsize for a in args)
    bytes_accessed += N * Ho * Wo * Cout * jnp.dtype(out_dtype).itemsize

    kernel = _make_conv3x3_kernel(bn, Wo, stride, relu, residual, id_stride)

    return pl.pallas_call(
        kernel,
        out_shape=jax.ShapeDtypeStruct((N, Ho, Wo, Cout), out_dtype),
        grid_spec=pltpu.PrefetchScalarGridSpec(
            num_scalar_prefetch=0,
            grid=grid,
            in_specs=in_specs,
            out_specs=pl.BlockSpec((bn, 1, Wo, Cout),
                                   lambda nb, ho, dh: (nb, ho, 0, 0)),
            scratch_shapes=[pltpu.VMEM((bn, Wo, Cout), jnp.float32)],
        ),
        compiler_params=pltpu.CompilerParams(
            dimension_semantics=("parallel", "parallel", "arbitrary"),
            vmem_limit_bytes=32 * 1024 * 1024,
        ),
        cost_estimate=pl.CostEstimate(flops=int(flops), transcendentals=0,
                                      bytes_accessed=int(bytes_accessed)),
    )(*args)


# ------------------------------- JAX glue -----------------------------------
def fold_bn(gamma, beta, mean, var, eps=EPS):
    scale = gamma / jnp.sqrt(var + eps)
    return scale, beta - mean * scale


def residual_block_forward(x_nchw, params, stride=1):
    x = jnp.transpose(x_nchw, (0, 2, 3, 1)).astype(jnp.float32)   # NHWC
    N, H, W, Cin = x.shape
    w1 = params["conv1_w"]                 # (Cout, Cin, 3, 3)  PyTorch OIHW
    w2 = params["conv2_w"]                 # (Cout, Cout, 3, 3)
    Cout = w1.shape[0]
    s1, b1 = fold_bn(*params["bn1"])
    s2, b2 = fold_bn(*params["bn2"])

    Ho = (H + 2 - 3) // stride + 1
    Wo = (W + 2 - 3) // stride + 1

    # Fold BN scale into the weights (per output channel), go HWIO, cast bf16.
    w1m = (jnp.transpose(w1, (2, 3, 1, 0)) * s1).astype(jnp.bfloat16)   # (3,3,Cin,Cout)
    w2m = (jnp.transpose(w2, (2, 3, 1, 0)) * s2).astype(jnp.bfloat16)   # (3,3,Cout,Cout)
    b1v = b1.reshape(1, Cout).astype(jnp.float32)
    b2v = b2.reshape(1, Cout).astype(jnp.float32)

    x_bf = x.astype(jnp.bfloat16)
    xp = jnp.pad(x_bf, ((0, 0), (1, 1), (1, 1), (0, 0)))      # conv zero-pad only

    bn_tile = _pick_batch_tile(N, Wo)

    # --- conv1 + bn1 + relu (bf16 intermediate) ------------------------------
    y1 = _conv3x3_bn(xp, w1m, b1v, stride=stride, Ho=Ho, Wo=Wo, bn=bn_tile,
                     relu=True, residual=None, out_dtype=jnp.bfloat16)

    y1p = jnp.pad(y1, ((0, 0), (1, 1), (1, 1), (0, 0)))

    # --- conv2 + bn2 + fused shortcut + residual add + relu ------------------
    downsample = (stride != 1) or (Cin != Cout)
    if downsample:
        sd, bd = fold_bn(*params["bn_ds"])
        wdm = (params["ds_w"][:, :, 0, 0].T * sd).astype(jnp.bfloat16)   # (Cin, Cout)
        bdv = bd.reshape(1, Cout).astype(jnp.float32)
        out = _conv3x3_bn(y1p, w2m, b2v, stride=1, Ho=Ho, Wo=Wo, bn=bn_tile,
                          relu=True, residual="downsample",
                          xid=x_bf, wd=wdm, bd=bdv, id_stride=stride,
                          out_dtype=jnp.float32)
    else:
        out = _conv3x3_bn(y1p, w2m, b2v, stride=1, Ho=Ho, Wo=Wo, bn=bn_tile,
                          relu=True, residual="identity",
                          xid=x_bf, out_dtype=jnp.float32)

    return jnp.transpose(out, (0, 3, 1, 2))   # back to NCHW


# ------------------------ pure-JAX reference (check) -------------------------
def residual_block_reference(x, params, stride=1, eps=EPS):
    def conv(x, w, s, p):
        return jax.lax.conv_general_dilated(
            x, w, (s, s), [(p, p), (p, p)],
            dimension_numbers=("NCHW", "OIHW", "NCHW"))

    def bn(x, gamma, beta, mean, var):
        g = gamma[None, :, None, None]; b = beta[None, :, None, None]
        m = mean[None, :, None, None]; v = var[None, :, None, None]
        return (x - m) / jnp.sqrt(v + eps) * g + b

    Cout, Cin = params["conv1_w"].shape[0], params["conv1_w"].shape[1]
    out = jax.nn.relu(bn(conv(x, params["conv1_w"], stride, 1), *params["bn1"]))
    out = bn(conv(out, params["conv2_w"], 1, 1), *params["bn2"])
    identity = x
    if stride != 1 or Cin != Cout:
        identity = bn(conv(x, params["ds_w"], stride, 0), *params["bn_ds"])
    return jax.nn.relu(out + identity)


# --------------------------------- main --------------------------------------
if __name__ == "__main__":
    N, Cin, Cout, H, W, stride = 2, 4, 8, 16, 16, 1   # downsample path active

    key = jax.random.PRNGKey(0)
    k = jax.random.split(key, 8)

    def bn_params(i, C):
        gamma = 1.0 + 0.10 * jnp.arange(C, dtype=jnp.float32)
        beta = 0.05 * jnp.arange(C, dtype=jnp.float32) - 0.1 * i
        mean = 0.02 * jnp.arange(C, dtype=jnp.float32)
        var = 1.0 + 0.03 * jnp.arange(C, dtype=jnp.float32)
        return (gamma, beta, mean, var)

    params = {
        "conv1_w": 0.1 * jax.random.normal(k[0], (Cout, Cin, 3, 3), jnp.float32),
        "conv2_w": 0.1 * jax.random.normal(k[1], (Cout, Cout, 3, 3), jnp.float32),
        "ds_w":    0.1 * jax.random.normal(k[2], (Cout, Cin, 1, 1), jnp.float32),
        "bn1": bn_params(1, Cout),
        "bn2": bn_params(2, Cout),
        "bn_ds": bn_params(3, Cout),
    }

    x = jax.random.normal(k[3], (N, Cin, H, W), jnp.float32)

    fwd = jax.jit(lambda xx: residual_block_forward(xx, params, stride=stride))
    out = jax.block_until_ready(fwd(x))

    ref = jax.block_until_ready(residual_block_reference(x, params, stride=stride))
    assert out.shape == ref.shape, (out.shape, ref.shape)
    max_err = float(jnp.max(jnp.abs(out - ref)))
    # bf16 activations/weights with f32 accumulation -> looser tolerance than f32.
    assert jnp.allclose(out, ref, atol=5e-2, rtol=5e-2), max_err

    print("KERNEL_OK")
</pallas_src>

<mosaic_0001>
module attributes {stable_mosaic.version = 11 : i64} {
  func.func @kernel(%arg0: i32, %arg1: i32, %arg2: i32, %arg3: memref<2x1x18x4xbf16, #tpu.memory_space<vmem>>, %arg4: memref<1x3x4x8xbf16, #tpu.memory_space<vmem>>, %arg5: memref<1x8xf32, #tpu.memory_space<vmem>>, %arg6: memref<2x1x16x8xbf16, #tpu.memory_space<vmem>>, %arg7: memref<2x16x8xf32, #tpu.memory_space<vmem>>) attributes {dimension_semantics = [#tpu.dimension_semantics<parallel>, #tpu.dimension_semantics<parallel>, #tpu.dimension_semantics<arbitrary>], iteration_bounds = array<i64: 1, 16, 3>, scalar_prefetch = 0 : i64, scratch_operands = 1 : i64, tpu.core_type = #tpu.core_type<tc>, window_params = [{transform_indices = @transform_0, window_bounds = array<i64: 2, 1, 18, 4>}, {transform_indices = @transform_1, window_bounds = array<i64: 1, 3, 4, 8>}, {pipeline_mode = #tpu.pipeline_mode<synchronous>, transform_indices = @transform_2, window_bounds = array<i64: 1, 8>}, {transform_indices = @transform_3, window_bounds = array<i64: 2, 1, 16, 8>}]} {
    %c0_i32 = arith.constant 0 : i32
    %0 = arith.cmpi eq, %arg2, %c0_i32 : i32
    %1 = arith.extui %0 : i1 to i32
    %c0_i32_0 = arith.constant 0 : i32
    %2 = arith.cmpi ne, %1, %c0_i32_0 : i32
    scf.if %2 {
      %cst_49 = arith.constant 0.000000e+00 : f32
      %75 = vector.broadcast %cst_49 : f32 to vector<2x16x8xf32>
      %c0_50 = arith.constant 0 : index
      %c0_51 = arith.constant 0 : index
      %c0_52 = arith.constant 0 : index
      %76 = vector.load %arg7[%c0_50, %c0_51, %c0_52] : memref<2x16x8xf32, #tpu.memory_space<vmem>>, vector<2x16x8xf32>
      tpu.vector_store %arg7[%c0_50, %c0_51, %c0_52], %75 {strides = array<i32>} : memref<2x16x8xf32, #tpu.memory_space<vmem>>, vector<2x16x8xf32>,
    } else {
    }
    %c0 = arith.constant 0 : index
    %c0_1 = arith.constant 0 : index
    %c0_2 = arith.constant 0 : index
    %c0_3 = arith.constant 0 : index
    %3 = vector.load %arg3[%c0, %c0_1, %c0_2, %c0_3] : memref<2x1x18x4xbf16, #tpu.memory_space<vmem>>, vector<2x1x18x4xbf16>
    %c0_4 = arith.constant 0 : index
    %c0_5 = arith.constant 0 : index
    %c0_6 = arith.constant 0 : index
    %c0_7 = arith.constant 0 : index
    %4 = vector.load %arg4[%c0_4, %c0_5, %c0_6, %c0_7] : memref<1x3x4x8xbf16, #tpu.memory_space<vmem>>, vector<1x3x4x8xbf16>
    %5 = vector.shape_cast %3 : vector<2x1x18x4xbf16> to vector<2x18x4xbf16>
    %6 = vector.extract_strided_slice %4 {offsets = [0, 0, 0, 0], sizes = [1, 1, 4, 8], strides = [1, 1, 1, 1]} : vector<1x3x4x8xbf16> to vector<1x1x4x8xbf16>
    %7 = vector.shape_cast %6 : vector<1x1x4x8xbf16> to vector<4x8xbf16>
    %8 = vector.extract_strided_slice %5 {offsets = [0, 0, 0], sizes = [1, 18, 4], strides = [1, 1, 1]} : vector<2x18x4xbf16> to vector<1x18x4xbf16>
    %9 = vector.shape_cast %8 : vector<1x18x4xbf16> to vector<18x4xbf16>
    %cst = arith.constant dense<0.000000e+00> : vector<18x8xf32>
    %10 = tpu.matmul %9, %7, %cst {dimension_numbers = #tpu.dot_dimension_numbers<[1], [0], [0], [1], [0, 0, 1, 1], [], []>} : vector<18x4xbf16>, vector<4x8xbf16>, vector<18x8xf32> -> vector<18x8xf32>
    %11 = vector.extract_strided_slice %10 {offsets = [0, 0], sizes = [16, 8], strides = [1, 1]} : vector<18x8xf32> to vector<16x8xf32>
    %c0_8 = arith.constant 0 : index
    %c0_9 = arith.constant 0 : index
    %c0_10 = arith.constant 0 : index
    %12 = vector.load %arg7[%c0_8, %c0_9, %c0_10] : memref<2x16x8xf32, #tpu.memory_space<vmem>>, vector<1x16x8xf32>
    %13 = vector.shape_cast %12 : vector<1x16x8xf32> to vector<16x8xf32>
    %14 = arith.addf %13, %11 : vector<16x8xf32>
    %c0_11 = arith.constant 0 : index
    %c0_12 = arith.constant 0 : index
    %c0_13 = arith.constant 0 : index
    %15 = vector.load %arg7[%c0_11, %c0_12, %c0_13] : memref<2x16x8xf32, #tpu.memory_space<vmem>>, vector<1x16x8xf32>
    %16 = vector.shape_cast %15 : vector<1x16x8xf32> to vector<16x8xf32>
    %17 = vector.shape_cast %14 : vector<16x8xf32> to vector<1x16x8xf32>
    tpu.vector_store %arg7[%c0_11, %c0_12, %c0_13], %17 {strides = array<i32>} : memref<2x16x8xf32, #tpu.memory_space<vmem>>, vector<1x16x8xf32>,
    %18 = vector.extract_strided_slice %5 {offsets = [1, 0, 0], sizes = [1, 18, 4], strides = [1, 1, 1]} : vector<2x18x4xbf16> to vector<1x18x4xbf16>
    %19 = vector.shape_cast %18 : vector<1x18x4xbf16> to vector<18x4xbf16>
    %cst_14 = arith.constant dense<0.000000e+00> : vector<18x8xf32>
    %20 = tpu.matmul %19, %7, %cst_14 {dimension_numbers = #tpu.dot_dimension_numbers<[1], [0], [0], [1], [0, 0, 1, 1], [], []>} : vector<18x4xbf16>, vector<4x8xbf16>, vector<18x8xf32> -> vector<18x8xf32>
    %21 = vector.extract_strided_slice %20 {offsets = [0, 0], sizes = [16, 8], strides = [1, 1]} : vector<18x8xf32> to vector<16x8xf32>
    %c1 = arith.constant 1 : index
    %c0_15 = arith.constant 0 : index
    %c0_16 = arith.constant 0 : index
    %22 = vector.load %arg7[%c1, %c0_15, %c0_16] : memref<2x16x8xf32, #tpu.memory_space<vmem>>, vector<1x16x8xf32>
    %23 = vector.shape_cast %22 : vector<1x16x8xf32> to vector<16x8xf32>
    %24 = arith.addf %23, %21 : vector<16x8xf32>
    %c1_17 = arith.constant 1 : index
    %c0_18 = arith.constant 0 : index
    %c0_19 = arith.constant 0 : index
    %25 = vector.load %arg7[%c1_17, %c0_18, %c0_19] : memref<2x16x8xf32, #tpu.memory_space<vmem>>, vector<1x16x8xf32>
    %26 = vector.shape_cast %25 : vector<1x16x8xf32> to vector<16x8xf32>
    %27 = vector.shape_cast %24 : vector<16x8xf32> to vector<1x16x8xf32>
    tpu.vector_store %arg7[%c1_17, %c0_18, %c0_19], %27 {strides = array<i32>} : memref<2x16x8xf32, #tpu.memory_space<vmem>>, vector<1x16x8xf32>,
    %28 = vector.extract_strided_slice %4 {offsets = [0, 1, 0, 0], sizes = [1, 1, 4, 8], strides = [1, 1, 1, 1]} : vector<1x3x4x8xbf16> to vector<1x1x4x8xbf16>
    %29 = vector.shape_cast %28 : vector<1x1x4x8xbf16> to vector<4x8xbf16>
    %30 = vector.extract_strided_slice %5 {offsets = [0, 0, 0], sizes = [1, 18, 4], strides = [1, 1, 1]} : vector<2x18x4xbf16> to vector<1x18x4xbf16>
    %31 = vector.shape_cast %30 : vector<1x18x4xbf16> to vector<18x4xbf16>
    %cst_20 = arith.constant dense<0.000000e+00> : vector<18x8xf32>
    %32 = tpu.matmul %31, %29, %cst_20 {dimension_numbers = #tpu.dot_dimension_numbers<[1], [0], [0], [1], [0, 0, 1, 1], [], []>} : vector<18x4xbf16>, vector<4x8xbf16>, vector<18x8xf32> -> vector<18x8xf32>
    %33 = vector.extract_strided_slice %32 {offsets = [1, 0], sizes = [16, 8], strides = [1, 1]} : vector<18x8xf32> to vector<16x8xf32>
    %c0_21 = arith.constant 0 : index
    %c0_22 = arith.constant 0 : index
    %c0_23 = arith.constant 0 : index
    %34 = vector.load %arg7[%c0_21, %c0_22, %c0_23] : memref<2x16x8xf32, #tpu.memory_space<vmem>>, vector<1x16x8xf32>
    %35 = vector.shape_cast %34 : vector<1x16x8xf32> to vector<16x8xf32>
    %36 = arith.addf %35, %33 : vector<16x8xf32>
    %c0_24 = arith.constant 0 : index
    %c0_25 = arith.constant 0 : index
    %c0_26 = arith.constant 0 : index
    %37 = vector.load %arg7[%c0_24, %c0_25, %c0_26] : memref<2x16x8xf32, #tpu.memory_space<vmem>>, vector<1x16x8xf32>
    %38 = vector.shape_cast %37 : vector<1x16x8xf32> to vector<16x8xf32>
    %39 = vector.shape_cast %36 : vector<16x8xf32> to vector<1x16x8xf32>
    tpu.vector_store %arg7[%c0_24, %c0_25, %c0_26], %39 {strides = array<i32>} : memref<2x16x8xf32, #tpu.memory_space<vmem>>, vector<1x16x8xf32>,
    %40 = vector.extract_strided_slice %5 {offsets = [1, 0, 0], sizes = [1, 18, 4], strides = [1, 1, 1]} : vector<2x18x4xbf16> to vector<1x18x4xbf16>
    %41 = vector.shape_cast %40 : vector<1x18x4xbf16> to vector<18x4xbf16>
    %cst_27 = arith.constant dense<0.000000e+00> : vector<18x8xf32>
    %42 = tpu.matmul %41, %29, %cst_27 {dimension_numbers = #tpu.dot_dimension_numbers<[1], [0], [0], [1], [0, 0, 1, 1], [], []>} : vector<18x4xbf16>, vector<4x8xbf16>, vector<18x8xf32> -> vector<18x8xf32>
    %43 = vector.extract_strided_slice %42 {offsets = [1, 0], sizes = [16, 8], strides = [1, 1]} : vector<18x8xf32> to vector<16x8xf32>
    %c1_28 = arith.constant 1 : index
    %c0_29 = arith.constant 0 : index
    %c0_30 = arith.constant 0 : index
    %44 = vector.load %arg7[%c1_28, %c0_29, %c0_30] : memref<2x16x8xf32, #tpu.memory_space<vmem>>, vector<1x16x8xf32>
    %45 = vector.shape_cast %44 : vector<1x16x8xf32> to vector<16x8xf32>
    %46 = arith.addf %45, %43 : vector<16x8xf32>
    %c1_31 = arith.constant 1 : index
    %c0_32 = arith.constant 0 : index
    %c0_33 = arith.constant 0 : index
    %47 = vector.load %arg7[%c1_31, %c0_32, %c0_33] : memref<2x16x8xf32, #tpu.memory_space<vmem>>, vector<1x16x8xf32>
    %48 = vector.shape_cast %47 : vector<1x16x8xf32> to vector<16x8xf32>
    %49 = vector.shape_cast %46 : vector<16x8xf32> to vector<1x16x8xf32>
    tpu.vector_store %arg7[%c1_31, %c0_32, %c0_33], %49 {strides = array<i32>} : memref<2x16x8xf32, #tpu.memory_space<vmem>>, vector<1x16x8xf32>,
    %50 = vector.extract_strided_slice %4 {offsets = [0, 2, 0, 0], sizes = [1, 1, 4, 8], strides = [1, 1, 1, 1]} : vector<1x3x4x8xbf16> to vector<1x1x4x8xbf16>
    %51 = vector.shape_cast %50 : vector<1x1x4x8xbf16> to vector<4x8xbf16>
    %52 = vector.extract_strided_slice %5 {offsets = [0, 0, 0], sizes = [1, 18, 4], strides = [1, 1, 1]} : vector<2x18x4xbf16> to vector<1x18x4xbf16>
    %53 = vector.shape_cast %52 : vector<1x18x4xbf16> to vector<18x4xbf16>
    %cst_34 = arith.constant dense<0.000000e+00> : vector<18x8xf32>
    %54 = tpu.matmul %53, %51, %cst_34 {dimension_numbers = #tpu.dot_dimension_numbers<[1], [0], [0], [1], [0, 0, 1, 1], [], []>} : vector<18x4xbf16>, vector<4x8xbf16>, vector<18x8xf32> -> vector<18x8xf32>
    %55 = vector.extract_strided_slice %54 {offsets = [2, 0], sizes = [16, 8], strides = [1, 1]} : vector<18x8xf32> to vector<16x8xf32>
    %c0_35 = arith.constant 0 : index
    %c0_36 = arith.constant 0 : index
    %c0_37 = arith.constant 0 : index
    %56 = vector.load %arg7[%c0_35, %c0_36, %c0_37] : memref<2x16x8xf32, #tpu.memory_space<vmem>>, vector<1x16x8xf32>
    %57 = vector.shape_cast %56 : vector<1x16x8xf32> to vector<16x8xf32>
    %58 = arith.addf %57, %55 : vector<16x8xf32>
    %c0_38 = arith.constant 0 : index
    %c0_39 = arith.constant 0 : index
    %c0_40 = arith.constant 0 : index
    %59 = vector.load %arg7[%c0_38, %c0_39, %c0_40] : memref<2x16x8xf32, #tpu.memory_space<vmem>>, vector<1x16x8xf32>
    %60 = vector.shape_cast %59 : vector<1x16x8xf32> to vector<16x8xf32>
    %61 = vector.shape_cast %58 : vector<16x8xf32> to vector<1x16x8xf32>
    tpu.vector_store %arg7[%c0_38, %c0_39, %c0_40], %61 {strides = array<i32>} : memref<2x16x8xf32, #tpu.memory_space<vmem>>, vector<1x16x8xf32>,
    %62 = vector.extract_strided_slice %5 {offsets = [1, 0, 0], sizes = [1, 18, 4], strides = [1, 1, 1]} : vector<2x18x4xbf16> to vector<1x18x4xbf16>
    %63 = vector.shape_cast %62 : vector<1x18x4xbf16> to vector<18x4xbf16>
    %cst_41 = arith.constant dense<0.000000e+00> : vector<18x8xf32>
    %64 = tpu.matmul %63, %51, %cst_41 {dimension_numbers = #tpu.dot_dimension_numbers<[1], [0], [0], [1], [0, 0, 1, 1], [], []>} : vector<18x4xbf16>, vector<4x8xbf16>, vector<18x8xf32> -> vector<18x8xf32>
    %65 = vector.extract_strided_slice %64 {offsets = [2, 0], sizes = [16, 8], strides = [1, 1]} : vector<18x8xf32> to vector<16x8xf32>
    %c1_42 = arith.constant 1 : index
    %c0_43 = arith.constant 0 : index
    %c0_44 = arith.constant 0 : index
    %66 = vector.load %arg7[%c1_42, %c0_43, %c0_44] : memref<2x16x8xf32, #tpu.memory_space<vmem>>, vector<1x16x8xf32>
    %67 = vector.shape_cast %66 : vector<1x16x8xf32> to vector<16x8xf32>
    %68 = arith.addf %67, %65 : vector<16x8xf32>
    %c1_45 = arith.constant 1 : index
    %c0_46 = arith.constant 0 : index
    %c0_47 = arith.constant 0 : index
    %69 = vector.load %arg7[%c1_45, %c0_46, %c0_47] : memref<2x16x8xf32, #tpu.memory_space<vmem>>, vector<1x16x8xf32>
    %70 = vector.shape_cast %69 : vector<1x16x8xf32> to vector<16x8xf32>
    %71 = vector.shape_cast %68 : vector<16x8xf32> to vector<1x16x8xf32>
    tpu.vector_store %arg7[%c1_45, %c0_46, %c0_47], %71 {strides = array<i32>} : memref<2x16x8xf32, #tpu.memory_space<vmem>>, vector<1x16x8xf32>,
    %c2_i32 = arith.constant 2 : i32
    %72 = arith.cmpi eq, %arg2, %c2_i32 : i32
    %73 = arith.extui %72 : i1 to i32
    %c0_i32_48 = arith.constant 0 : i32
    %74 = arith.cmpi ne, %73, %c0_i32_48 : i32
    scf.if %74 {
      %c0_49 = arith.constant 0 : index
      %c0_50 = arith.constant 0 : index
      %75 = vector.load %arg5[%c0_49, %c0_50] : memref<1x8xf32, #tpu.memory_space<vmem>>, vector<1x8xf32>
      %c0_51 = arith.constant 0 : index
      %c0_52 = arith.constant 0 : index
      %c0_53 = arith.constant 0 : index
      %76 = vector.load %arg7[%c0_51, %c0_52, %c0_53] : memref<2x16x8xf32, #tpu.memory_space<vmem>>, vector<1x16x8xf32>
      %77 = vector.shape_cast %76 : vector<1x16x8xf32> to vector<16x8xf32>
      %78 = vector.broadcast %75 : vector<1x8xf32> to vector<16x8xf32>
      %79 = arith.addf %77, %78 : vector<16x8xf32>
      %cst_54 = arith.constant 0.000000e+00 : f32
      %80 = vector.broadcast %cst_54 : f32 to vector<16x8xf32>
      %81 = arith.maximumf %79, %80 : vector<16x8xf32>
      %82 = arith.truncf %81 : vector<16x8xf32> to vector<16x8xbf16>
      %c0_55 = arith.constant 0 : index
      %c0_56 = arith.constant 0 : index
      %c0_57 = arith.constant 0 : index
      %c0_58 = arith.constant 0 : index
      %83 = vector.load %arg6[%c0_55, %c0_56, %c0_57, %c0_58] : memref<2x1x16x8xbf16, #tpu.memory_space<vmem>>, vector<1x1x16x8xbf16>
      %84 = vector.shape_cast %83 : vector<1x1x16x8xbf16> to vector<16x8xbf16>
      %85 = vector.shape_cast %82 : vector<16x8xbf16> to vector<1x1x16x8xbf16>
      tpu.vector_store %arg6[%c0_55, %c0_56, %c0_57, %c0_58], %85 {strides = array<i32>} : memref<2x1x16x8xbf16, #tpu.memory_space<vmem>>, vector<1x1x16x8xbf16>,
      %c1_59 = arith.constant 1 : index
      %c0_60 = arith.constant 0 : index
      %c0_61 = arith.constant 0 : index
      %86 = vector.load %arg7[%c1_59, %c0_60, %c0_61] : memref<2x16x8xf32, #tpu.memory_space<vmem>>, vector<1x16x8xf32>
      %87 = vector.shape_cast %86 : vector<1x16x8xf32> to vector<16x8xf32>
      %88 = vector.broadcast %75 : vector<1x8xf32> to vector<16x8xf32>
      %89 = arith.addf %87, %88 : vector<16x8xf32>
      %cst_62 = arith.constant 0.000000e+00 : f32
      %90 = vector.broadcast %cst_62 : f32 to vector<16x8xf32>
      %91 = arith.maximumf %89, %90 : vector<16x8xf32>
      %92 = arith.truncf %91 : vector<16x8xf32> to vector<16x8xbf16>
      %c1_63 = arith.constant 1 : index
      %c0_64 = arith.constant 0 : index
      %c0_65 = arith.constant 0 : index
      %c0_66 = arith.constant 0 : index
      %93 = vector.load %arg6[%c1_63, %c0_64, %c0_65, %c0_66] : memref<2x1x16x8xbf16, #tpu.memory_space<vmem>>, vector<1x1x16x8xbf16>
      %94 = vector.shape_cast %93 : vector<1x1x16x8xbf16> to vector<16x8xbf16>
      %95 = vector.shape_cast %92 : vector<16x8xbf16> to vector<1x1x16x8xbf16>
      tpu.vector_store %arg6[%c1_63, %c0_64, %c0_65, %c0_66], %95 {strides = array<i32>} : memref<2x1x16x8xbf16, #tpu.memory_space<vmem>>, vector<1x1x16x8xbf16>,
    } else {
    }
    return
  }
  func.func @transform_0(%arg0: i32, %arg1: i32, %arg2: i32) -> (i32, i32, i32, i32) {
    %c1_i32 = arith.constant 1 : i32
    %0 = arith.muli %arg1, %c1_i32 : i32
    %1 = arith.addi %0, %arg2 : i32
    %c0_i32 = arith.constant 0 : i32
    %c0_i32_0 = arith.constant 0 : i32
    %c0_i32_1 = arith.constant 0 : i32
    return %arg0, %1, %c0_i32, %c0_i32_0 : i32, i32, i32, i32
  }
  func.func @transform_1(%arg0: i32, %arg1: i32, %arg2: i32) -> (i32, i32, i32, i32) {
    %c0_i32 = arith.constant 0 : i32
    %c0_i32_0 = arith.constant 0 : i32
    %c0_i32_1 = arith.constant 0 : i32
    %c0_i32_2 = arith.constant 0 : i32
    return %arg2, %c0_i32, %c0_i32_0, %c0_i32_1 : i32, i32, i32, i32
  }
  func.func @transform_2(%arg0: i32, %arg1: i32, %arg2: i32) -> (i32, i32) {
    %c0_i32 = arith.constant 0 : i32
    %c0_i32_0 = arith.constant 0 : i32
    %c0_i32_1 = arith.constant 0 : i32
    return %c0_i32, %c0_i32_0 : i32, i32
  }
  func.func @transform_3(%arg0: i32, %arg1: i32, %arg2: i32) -> (i32, i32, i32, i32) {
    %c0_i32 = arith.constant 0 : i32
    %c0_i32_0 = arith.constant 0 : i32
    %c0_i32_1 = arith.constant 0 : i32
    return %arg0, %arg1, %c0_i32, %c0_i32_0 : i32, i32, i32, i32
  }
}

module attributes {stable_mosaic.version = 11 : i64} {
  func.func @kernel(%arg0: i32, %arg1: i32, %arg2: i32, %arg3: memref<2x1x18x8xbf16, #tpu.memory_space<vmem>>, %arg4: memref<1x3x8x8xbf16, #tpu.memory_space<vmem>>, %arg5: memref<1x8xf32, #tpu.memory_space<vmem>>, %arg6: memref<2x1x16x4xbf16, #tpu.memory_space<vmem>>, %arg7: memref<4x8xbf16, #tpu.memory_space<vmem>>, %arg8: memref<1x8xf32, #tpu.memory_space<vmem>>, %arg9: memref<2x1x16x8xf32, #tpu.memory_space<vmem>>, %arg10: memref<2x16x8xf32, #tpu.memory_space<vmem>>) attributes {dimension_semantics = [#tpu.dimension_semantics<parallel>, #tpu.dimension_semantics<parallel>, #tpu.dimension_semantics<arbitrary>], iteration_bounds = array<i64: 1, 16, 3>, scalar_prefetch = 0 : i64, scratch_operands = 1 : i64, tpu.core_type = #tpu.core_type<tc>, window_params = [{transform_indices = @transform_0, window_bounds = array<i64: 2, 1, 18, 8>}, {transform_indices = @transform_1, window_bounds = array<i64: 1, 3, 8, 8>}, {pipeline_mode = #tpu.pipeline_mode<synchronous>, transform_indices = @transform_2, window_bounds = array<i64: 1, 8>}, {transform_indices = @transform_3, window_bounds = array<i64: 2, 1, 16, 4>}, {pipeline_mode = #tpu.pipeline_mode<synchronous>, transform_indices = @transform_4, window_bounds = array<i64: 4, 8>}, {pipeline_mode = #tpu.pipeline_mode<synchronous>, transform_indices = @transform_5, window_bounds = array<i64: 1, 8>}, {transform_indices = @transform_6, window_bounds = array<i64: 2, 1, 16, 8>}]} {
    %c0_i32 = arith.constant 0 : i32
    %0 = arith.cmpi eq, %arg2, %c0_i32 : i32
    %1 = arith.extui %0 : i1 to i32
    %c0_i32_0 = arith.constant 0 : i32
    %2 = arith.cmpi ne, %1, %c0_i32_0 : i32
    scf.if %2 {
      %cst_49 = arith.constant 0.000000e+00 : f32
      %75 = vector.broadcast %cst_49 : f32 to vector<2x16x8xf32>
      %c0_50 = arith.constant 0 : index
      %c0_51 = arith.constant 0 : index
      %c0_52 = arith.constant 0 : index
      %76 = vector.load %arg10[%c0_50, %c0_51, %c0_52] : memref<2x16x8xf32, #tpu.memory_space<vmem>>, vector<2x16x8xf32>
      tpu.vector_store %arg10[%c0_50, %c0_51, %c0_52], %75 {strides = array<i32>} : memref<2x16x8xf32, #tpu.memory_space<vmem>>, vector<2x16x8xf32>,
    } else {
    }
    %c0 = arith.constant 0 : index
    %c0_1 = arith.constant 0 : index
    %c0_2 = arith.constant 0 : index
    %c0_3 = arith.constant 0 : index
    %3 = vector.load %arg3[%c0, %c0_1, %c0_2, %c0_3] : memref<2x1x18x8xbf16, #tpu.memory_space<vmem>>, vector<2x1x18x8xbf16>
    %c0_4 = arith.constant 0 : index
    %c0_5 = arith.constant 0 : index
    %c0_6 = arith.constant 0 : index
    %c0_7 = arith.constant 0 : index
    %4 = vector.load %arg4[%c0_4, %c0_5, %c0_6, %c0_7] : memref<1x3x8x8xbf16, #tpu.memory_space<vmem>>, vector<1x3x8x8xbf16>
    %5 = vector.shape_cast %3 : vector<2x1x18x8xbf16> to vector<2x18x8xbf16>
    %6 = vector.extract_strided_slice %4 {offsets = [0, 0, 0, 0], sizes = [1, 1, 8, 8], strides = [1, 1, 1, 1]} : vector<1x3x8x8xbf16> to vector<1x1x8x8xbf16>
    %7 = vector.shape_cast %6 : vector<1x1x8x8xbf16> to vector<8x8xbf16>
    %8 = vector.extract_strided_slice %5 {offsets = [0, 0, 0], sizes = [1, 18, 8], strides = [1, 1, 1]} : vector<2x18x8xbf16> to vector<1x18x8xbf16>
    %9 = vector.shape_cast %8 : vector<1x18x8xbf16> to vector<18x8xbf16>
    %cst = arith.constant dense<0.000000e+00> : vector<18x8xf32>
    %10 = tpu.matmul %9, %7, %cst {dimension_numbers = #tpu.dot_dimension_numbers<[1], [0], [0], [1], [0, 0, 1, 1], [], []>} : vector<18x8xbf16>, vector<8x8xbf16>, vector<18x8xf32> -> vector<18x8xf32>
    %11 = vector.extract_strided_slice %10 {offsets = [0, 0], sizes = [16, 8], strides = [1, 1]} : vector<18x8xf32> to vector<16x8xf32>
    %c0_8 = arith.constant 0 : index
    %c0_9 = arith.constant 0 : index
    %c0_10 = arith.constant 0 : index
    %12 = vector.load %arg10[%c0_8, %c0_9, %c0_10] : memref<2x16x8xf32, #tpu.memory_space<vmem>>, vector<1x16x8xf32>
    %13 = vector.shape_cast %12 : vector<1x16x8xf32> to vector<16x8xf32>
    %14 = arith.addf %13, %11 : vector<16x8xf32>
    %c0_11 = arith.constant 0 : index
    %c0_12 = arith.constant 0 : index
    %c0_13 = arith.constant 0 : index
    %15 = vector.load %arg10[%c0_11, %c0_12, %c0_13] : memref<2x16x8xf32, #tpu.memory_space<vmem>>, vector<1x16x8xf32>
    %16 = vector.shape_cast %15 : vector<1x16x8xf32> to vector<16x8xf32>
    %17 = vector.shape_cast %14 : vector<16x8xf32> to vector<1x16x8xf32>
    tpu.vector_store %arg10[%c0_11, %c0_12, %c0_13], %17 {strides = array<i32>} : memref<2x16x8xf32, #tpu.memory_space<vmem>>, vector<1x16x8xf32>,
    %18 = vector.extract_strided_slice %5 {offsets = [1, 0, 0], sizes = [1, 18, 8], strides = [1, 1, 1]} : vector<2x18x8xbf16> to vector<1x18x8xbf16>
    %19 = vector.shape_cast %18 : vector<1x18x8xbf16> to vector<18x8xbf16>
    %cst_14 = arith.constant dense<0.000000e+00> : vector<18x8xf32>
    %20 = tpu.matmul %19, %7, %cst_14 {dimension_numbers = #tpu.dot_dimension_numbers<[1], [0], [0], [1], [0, 0, 1, 1], [], []>} : vector<18x8xbf16>, vector<8x8xbf16>, vector<18x8xf32> -> vector<18x8xf32>
    %21 = vector.extract_strided_slice %20 {offsets = [0, 0], sizes = [16, 8], strides = [1, 1]} : vector<18x8xf32> to vector<16x8xf32>
    %c1 = arith.constant 1 : index
    %c0_15 = arith.constant 0 : index
    %c0_16 = arith.constant 0 : index
    %22 = vector.load %arg10[%c1, %c0_15, %c0_16] : memref<2x16x8xf32, #tpu.memory_space<vmem>>, vector<1x16x8xf32>
    %23 = vector.shape_cast %22 : vector<1x16x8xf32> to vector<16x8xf32>
    %24 = arith.addf %23, %21 : vector<16x8xf32>
    %c1_17 = arith.constant 1 : index
    %c0_18 = arith.constant 0 : index
    %c0_19 = arith.constant 0 : index
    %25 = vector.load %arg10[%c1_17, %c0_18, %c0_19] : memref<2x16x8xf32, #tpu.memory_space<vmem>>, vector<1x16x8xf32>
    %26 = vector.shape_cast %25 : vector<1x16x8xf32> to vector<16x8xf32>
    %27 = vector.shape_cast %24 : vector<16x8xf32> to vector<1x16x8xf32>
    tpu.vector_store %arg10[%c1_17, %c0_18, %c0_19], %27 {strides = array<i32>} : memref<2x16x8xf32, #tpu.memory_space<vmem>>, vector<1x16x8xf32>,
    %28 = vector.extract_strided_slice %4 {offsets = [0, 1, 0, 0], sizes = [1, 1, 8, 8], strides = [1, 1, 1, 1]} : vector<1x3x8x8xbf16> to vector<1x1x8x8xbf16>
    %29 = vector.shape_cast %28 : vector<1x1x8x8xbf16> to vector<8x8xbf16>
    %30 = vector.extract_strided_slice %5 {offsets = [0, 0, 0], sizes = [1, 18, 8], strides = [1, 1, 1]} : vector<2x18x8xbf16> to vector<1x18x8xbf16>
    %31 = vector.shape_cast %30 : vector<1x18x8xbf16> to vector<18x8xbf16>
    %cst_20 = arith.constant dense<0.000000e+00> : vector<18x8xf32>
    %32 = tpu.matmul %31, %29, %cst_20 {dimension_numbers = #tpu.dot_dimension_numbers<[1], [0], [0], [1], [0, 0, 1, 1], [], []>} : vector<18x8xbf16>, vector<8x8xbf16>, vector<18x8xf32> -> vector<18x8xf32>
    %33 = vector.extract_strided_slice %32 {offsets = [1, 0], sizes = [16, 8], strides = [1, 1]} : vector<18x8xf32> to vector<16x8xf32>
    %c0_21 = arith.constant 0 : index
    %c0_22 = arith.constant 0 : index
    %c0_23 = arith.constant 0 : index
    %34 = vector.load %arg10[%c0_21, %c0_22, %c0_23] : memref<2x16x8xf32, #tpu.memory_space<vmem>>, vector<1x16x8xf32>
    %35 = vector.shape_cast %34 : vector<1x16x8xf32> to vector<16x8xf32>
    %36 = arith.addf %35, %33 : vector<16x8xf32>
    %c0_24 = arith.constant 0 : index
    %c0_25 = arith.constant 0 : index
    %c0_26 = arith.constant 0 : index
    %37 = vector.load %arg10[%c0_24, %c0_25, %c0_26] : memref<2x16x8xf32, #tpu.memory_space<vmem>>, vector<1x16x8xf32>
    %38 = vector.shape_cast %37 : vector<1x16x8xf32> to vector<16x8xf32>
    %39 = vector.shape_cast %36 : vector<16x8xf32> to vector<1x16x8xf32>
    tpu.vector_store %arg10[%c0_24, %c0_25, %c0_26], %39 {strides = array<i32>} : memref<2x16x8xf32, #tpu.memory_space<vmem>>, vector<1x16x8xf32>,
    %40 = vector.extract_strided_slice %5 {offsets = [1, 0, 0], sizes = [1, 18, 8], strides = [1, 1, 1]} : vector<2x18x8xbf16> to vector<1x18x8xbf16>
    %41 = vector.shape_cast %40 : vector<1x18x8xbf16> to vector<18x8xbf16>
    %cst_27 = arith.constant dense<0.000000e+00> : vector<18x8xf32>
    %42 = tpu.matmul %41, %29, %cst_27 {dimension_numbers = #tpu.dot_dimension_numbers<[1], [0], [0], [1], [0, 0, 1, 1], [], []>} : vector<18x8xbf16>, vector<8x8xbf16>, vector<18x8xf32> -> vector<18x8xf32>
    %43 = vector.extract_strided_slice %42 {offsets = [1, 0], sizes = [16, 8], strides = [1, 1]} : vector<18x8xf32> to vector<16x8xf32>
    %c1_28 = arith.constant 1 : index
    %c0_29 = arith.constant 0 : index
    %c0_30 = arith.constant 0 : index
    %44 = vector.load %arg10[%c1_28, %c0_29, %c0_30] : memref<2x16x8xf32, #tpu.memory_space<vmem>>, vector<1x16x8xf32>
    %45 = vector.shape_cast %44 : vector<1x16x8xf32> to vector<16x8xf32>
    %46 = arith.addf %45, %43 : vector<16x8xf32>
    %c1_31 = arith.constant 1 : index
    %c0_32 = arith.constant 0 : index
    %c0_33 = arith.constant 0 : index
    %47 = vector.load %arg10[%c1_31, %c0_32, %c0_33] : memref<2x16x8xf32, #tpu.memory_space<vmem>>, vector<1x16x8xf32>
    %48 = vector.shape_cast %47 : vector<1x16x8xf32> to vector<16x8xf32>
    %49 = vector.shape_cast %46 : vector<16x8xf32> to vector<1x16x8xf32>
    tpu.vector_store %arg10[%c1_31, %c0_32, %c0_33], %49 {strides = array<i32>} : memref<2x16x8xf32, #tpu.memory_space<vmem>>, vector<1x16x8xf32>,
    %50 = vector.extract_strided_slice %4 {offsets = [0, 2, 0, 0], sizes = [1, 1, 8, 8], strides = [1, 1, 1, 1]} : vector<1x3x8x8xbf16> to vector<1x1x8x8xbf16>
    %51 = vector.shape_cast %50 : vector<1x1x8x8xbf16> to vector<8x8xbf16>
    %52 = vector.extract_strided_slice %5 {offsets = [0, 0, 0], sizes = [1, 18, 8], strides = [1, 1, 1]} : vector<2x18x8xbf16> to vector<1x18x8xbf16>
    %53 = vector.shape_cast %52 : vector<1x18x8xbf16> to vector<18x8xbf16>
    %cst_34 = arith.constant dense<0.000000e+00> : vector<18x8xf32>
    %54 = tpu.matmul %53, %51, %cst_34 {dimension_numbers = #tpu.dot_dimension_numbers<[1], [0], [0], [1], [0, 0, 1, 1], [], []>} : vector<18x8xbf16>, vector<8x8xbf16>, vector<18x8xf32> -> vector<18x8xf32>
    %55 = vector.extract_strided_slice %54 {offsets = [2, 0], sizes = [16, 8], strides = [1, 1]} : vector<18x8xf32> to vector<16x8xf32>
    %c0_35 = arith.constant 0 : index
    %c0_36 = arith.constant 0 : index
    %c0_37 = arith.constant 0 : index
    %56 = vector.load %arg10[%c0_35, %c0_36, %c0_37] : memref<2x16x8xf32, #tpu.memory_space<vmem>>, vector<1x16x8xf32>
    %57 = vector.shape_cast %56 : vector<1x16x8xf32> to vector<16x8xf32>
    %58 = arith.addf %57, %55 : vector<16x8xf32>
    %c0_38 = arith.constant 0 : index
    %c0_39 = arith.constant 0 : index
    %c0_40 = arith.constant 0 : index
    %59 = vector.load %arg10[%c0_38, %c0_39, %c0_40] : memref<2x16x8xf32, #tpu.memory_space<vmem>>, vector<1x16x8xf32>
    %60 = vector.shape_cast %59 : vector<1x16x8xf32> to vector<16x8xf32>
    %61 = vector.shape_cast %58 : vector<16x8xf32> to vector<1x16x8xf32>
    tpu.vector_store %arg10[%c0_38, %c0_39, %c0_40], %61 {strides = array<i32>} : memref<2x16x8xf32, #tpu.memory_space<vmem>>, vector<1x16x8xf32>,
    %62 = vector.extract_strided_slice %5 {offsets = [1, 0, 0], sizes = [1, 18, 8], strides = [1, 1, 1]} : vector<2x18x8xbf16> to vector<1x18x8xbf16>
    %63 = vector.shape_cast %62 : vector<1x18x8xbf16> to vector<18x8xbf16>
    %cst_41 = arith.constant dense<0.000000e+00> : vector<18x8xf32>
    %64 = tpu.matmul %63, %51, %cst_41 {dimension_numbers = #tpu.dot_dimension_numbers<[1], [0], [0], [1], [0, 0, 1, 1], [], []>} : vector<18x8xbf16>, vector<8x8xbf16>, vector<18x8xf32> -> vector<18x8xf32>
    %65 = vector.extract_strided_slice %64 {offsets = [2, 0], sizes = [16, 8], strides = [1, 1]} : vector<18x8xf32> to vector<16x8xf32>
    %c1_42 = arith.constant 1 : index
    %c0_43 = arith.constant 0 : index
    %c0_44 = arith.constant 0 : index
    %66 = vector.load %arg10[%c1_42, %c0_43, %c0_44] : memref<2x16x8xf32, #tpu.memory_space<vmem>>, vector<1x16x8xf32>
    %67 = vector.shape_cast %66 : vector<1x16x8xf32> to vector<16x8xf32>
    %68 = arith.addf %67, %65 : vector<16x8xf32>
    %c1_45 = arith.constant 1 : index
    %c0_46 = arith.constant 0 : index
    %c0_47 = arith.constant 0 : index
    %69 = vector.load %arg10[%c1_45, %c0_46, %c0_47] : memref<2x16x8xf32, #tpu.memory_space<vmem>>, vector<1x16x8xf32>
    %70 = vector.shape_cast %69 : vector<1x16x8xf32> to vector<16x8xf32>
    %71 = vector.shape_cast %68 : vector<16x8xf32> to vector<1x16x8xf32>
    tpu.vector_store %arg10[%c1_45, %c0_46, %c0_47], %71 {strides = array<i32>} : memref<2x16x8xf32, #tpu.memory_space<vmem>>, vector<1x16x8xf32>,
    %c2_i32 = arith.constant 2 : i32
    %72 = arith.cmpi eq, %arg2, %c2_i32 : i32
    %73 = arith.extui %72 : i1 to i32
    %c0_i32_48 = arith.constant 0 : i32
    %74 = arith.cmpi ne, %73, %c0_i32_48 : i32
    scf.if %74 {
      %c0_49 = arith.constant 0 : index
      %c0_50 = arith.constant 0 : index
      %75 = vector.load %arg5[%c0_49, %c0_50] : memref<1x8xf32, #tpu.memory_space<vmem>>, vector<1x8xf32>
      %c0_51 = arith.constant 0 : index
      %c0_52 = arith.constant 0 : index
      %c0_53 = arith.constant 0 : index
      %c0_54 = arith.constant 0 : index
      %76 = vector.load %arg6[%c0_51, %c0_52, %c0_53, %c0_54] : memref<2x1x16x4xbf16, #tpu.memory_space<vmem>>, vector<2x1x16x4xbf16>
      %c0_55 = arith.constant 0 : index
      %c0_56 = arith.constant 0 : index
      %77 = vector.load %arg7[%c0_55, %c0_56] : memref<4x8xbf16, #tpu.memory_space<vmem>>, vector<4x8xbf16>
      %c0_57 = arith.constant 0 : index
      %c0_58 = arith.constant 0 : index
      %78 = vector.load %arg8[%c0_57, %c0_58] : memref<1x8xf32, #tpu.memory_space<vmem>>, vector<1x8xf32>
      %c0_59 = arith.constant 0 : index
      %c0_60 = arith.constant 0 : index
      %c0_61 = arith.constant 0 : index
      %79 = vector.load %arg10[%c0_59, %c0_60, %c0_61] : memref<2x16x8xf32, #tpu.memory_space<vmem>>, vector<1x16x8xf32>
      %80 = vector.shape_cast %79 : vector<1x16x8xf32> to vector<16x8xf32>
      %81 = vector.broadcast %75 : vector<1x8xf32> to vector<16x8xf32>
      %82 = arith.addf %80, %81 : vector<16x8xf32>
      %83 = vector.extract_strided_slice %76 {offsets = [0, 0, 0, 0], sizes = [1, 1, 16, 4], strides = [1, 1, 1, 1]} : vector<2x1x16x4xbf16> to vector<1x1x16x4xbf16>
      %84 = vector.shape_cast %83 : vector<1x1x16x4xbf16> to vector<16x4xbf16>
      %cst_62 = arith.constant dense<0.000000e+00> : vector<16x8xf32>
      %85 = tpu.matmul %84, %77, %cst_62 {dimension_numbers = #tpu.dot_dimension_numbers<[1], [0], [0], [1], [0, 0, 1, 1], [], []>} : vector<16x4xbf16>, vector<4x8xbf16>, vector<16x8xf32> -> vector<16x8xf32>
      %86 = arith.addf %82, %85 : vector<16x8xf32>
      %87 = vector.broadcast %78 : vector<1x8xf32> to vector<16x8xf32>
      %88 = arith.addf %86, %87 : vector<16x8xf32>
      %cst_63 = arith.constant 0.000000e+00 : f32
      %89 = vector.broadcast %cst_63 : f32 to vector<16x8xf32>
      %90 = arith.maximumf %88, %89 : vector<16x8xf32>
      %c0_64 = arith.constant 0 : index
      %c0_65 = arith.constant 0 : index
      %c0_66 = arith.constant 0 : index
      %c0_67 = arith.constant 0 : index
      %91 = vector.load %arg9[%c0_64, %c0_65, %c0_66, %c0_67] : memref<2x1x16x8xf32, #tpu.memory_space<vmem>>, vector<1x1x16x8xf32>
      %92 = vector.shape_cast %91 : vector<1x1x16x8xf32> to vector<16x8xf32>
      %93 = vector.shape_cast %90 : vector<16x8xf32> to vector<1x1x16x8xf32>
      tpu.vector_store %arg9[%c0_64, %c0_65, %c0_66, %c0_67], %93 {strides = array<i32>} : memref<2x1x16x8xf32, #tpu.memory_space<vmem>>, vector<1x1x16x8xf32>,
      %c1_68 = arith.constant 1 : index
      %c0_69 = arith.constant 0 : index
      %c0_70 = arith.constant 0 : index
      %94 = vector.load %arg10[%c1_68, %c0_69, %c0_70] : memref<2x16x8xf32, #tpu.memory_space<vmem>>, vector<1x16x8xf32>
      %95 = vector.shape_cast %94 : vector<1x16x8xf32> to vector<16x8xf32>
      %96 = vector.broadcast %75 : vector<1x8xf32> to vector<16x8xf32>
      %97 = arith.addf %95, %96 : vector<16x8xf32>
      %98 = vector.extract_strided_slice %76 {offsets = [1, 0, 0, 0], sizes = [1, 1, 16, 4], strides = [1, 1, 1, 1]} : vector<2x1x16x4xbf16> to vector<1x1x16x4xbf16>
      %99 = vector.shape_cast %98 : vector<1x1x16x4xbf16> to vector<16x4xbf16>
      %cst_71 = arith.constant dense<0.000000e+00> : vector<16x8xf32>
      %100 = tpu.matmul %99, %77, %cst_71 {dimension_numbers = #tpu.dot_dimension_numbers<[1], [0], [0], [1], [0, 0, 1, 1], [], []>} : vector<16x4xbf16>, vector<4x8xbf16>, vector<16x8xf32> -> vector<16x8xf32>
      %101 = arith.addf %97, %100 : vector<16x8xf32>
      %102 = vector.broadcast %78 : vector<1x8xf32> to vector<16x8xf32>
      %103 = arith.addf %101, %102 : vector<16x8xf32>
      %cst_72 = arith.constant 0.000000e+00 : f32
      %104 = vector.broadcast %cst_72 : f32 to vector<16x8xf32>
      %105 = arith.maximumf %103, %104 : vector<16x8xf32>
      %c1_73 = arith.constant 1 : index
      %c0_74 = arith.constant 0 : index
      %c0_75 = arith.constant 0 : index
      %c0_76 = arith.constant 0 : index
      %106 = vector.load %arg9[%c1_73, %c0_74, %c0_75, %c0_76] : memref<2x1x16x8xf32, #tpu.memory_space<vmem>>, vector<1x1x16x8xf32>
      %107 = vector.shape_cast %106 : vector<1x1x16x8xf32> to vector<16x8xf32>
      %108 = vector.shape_cast %105 : vector<16x8xf32> to vector<1x1x16x8xf32>
      tpu.vector_store %arg9[%c1_73, %c0_74, %c0_75, %c0_76], %108 {strides = array<i32>} : memref<2x1x16x8xf32, #tpu.memory_space<vmem>>, vector<1x1x16x8xf32>,
    } else {
    }
    return
  }
  func.func @transform_0(%arg0: i32, %arg1: i32, %arg2: i32) -> (i32, i32, i32, i32) {
    %c1_i32 = arith.constant 1 : i32
    %0 = arith.muli %arg1, %c1_i32 : i32
    %1 = arith.addi %0, %arg2 : i32
    %c0_i32 = arith.constant 0 : i32
    %c0_i32_0 = arith.constant 0 : i32
    %c0_i32_1 = arith.constant 0 : i32
    return %arg0, %1, %c0_i32, %c0_i32_0 : i32, i32, i32, i32
  }
  func.func @transform_1(%arg0: i32, %arg1: i32, %arg2: i32) -> (i32, i32, i32, i32) {
    %c0_i32 = arith.constant 0 : i32
    %c0_i32_0 = arith.constant 0 : i32
    %c0_i32_1 = arith.constant 0 : i32
    %c0_i32_2 = arith.constant 0 : i32
    return %arg2, %c0_i32, %c0_i32_0, %c0_i32_1 : i32, i32, i32, i32
  }
  func.func @transform_2(%arg0: i32, %arg1: i32, %arg2: i32) -> (i32, i32) {
    %c0_i32 = arith.constant 0 : i32
    %c0_i32_0 = arith.constant 0 : i32
    %c0_i32_1 = arith.constant 0 : i32
    return %c0_i32, %c0_i32_0 : i32, i32
  }
  func.func @transform_3(%arg0: i32, %arg1: i32, %arg2: i32) -> (i32, i32, i32, i32) {
    %c1_i32 = arith.constant 1 : i32
    %0 = arith.muli %arg1, %c1_i32 : i32
    %c0_i32 = arith.constant 0 : i32
    %c0_i32_0 = arith.constant 0 : i32
    %c0_i32_1 = arith.constant 0 : i32
    return %arg0, %0, %c0_i32, %c0_i32_0 : i32, i32, i32, i32
  }
  func.func @transform_4(%arg0: i32, %arg1: i32, %arg2: i32) -> (i32, i32) {
    %c0_i32 = arith.constant 0 : i32
    %c0_i32_0 = arith.constant 0 : i32
    %c0_i32_1 = arith.constant 0 : i32
    return %c0_i32, %c0_i32_0 : i32, i32
  }
  func.func @transform_5(%arg0: i32, %arg1: i32, %arg2: i32) -> (i32, i32) {
    %c0_i32 = arith.constant 0 : i32
    %c0_i32_0 = arith.constant 0 : i32
    %c0_i32_1 = arith.constant 0 : i32
    return %c0_i32, %c0_i32_0 : i32, i32
  }
  func.func @transform_6(%arg0: i32, %arg1: i32, %arg2: i32) -> (i32, i32, i32, i32) {
    %c0_i32 = arith.constant 0 : i32
    %c0_i32_0 = arith.constant 0 : i32
    %c0_i32_1 = arith.constant 0 : i32
    return %arg0, %arg1, %c0_i32, %c0_i32_0 : i32, i32, i32, i32
  }
}

</mosaic_0001>

<llo_original>
// kernel: _lambda_.2
$region0: #{_lambda_.2}
  #allocation0 [shape = 'u32[]', space=smem, size = 0x4, offset = 0x4, fixed_abs, tag = 'smem constant byte address 0x4 - core index']
  #allocation1 [shape = 'u32[144,128]{1,0:T(1,128)}', space=vmem, size = 0x12000, scoped, tag = 'internal scratch']
  #allocation2 [shape = 'f32[2,16,8]{2,1,0:T(8,128)}', space=vmem, size = 0x4000, scoped, tag = 'scratch operand']
  %s0 = inlined_call_operand.vmem [shape: bf16[2,18,18,4], index: 0, kind: input, shape index: {}]
  %s1 = inlined_call_operand.vmem [shape: bf16[3,3,4,8], index: 1, kind: input, shape index: {}]
  %s2 = inlined_call_operand.vmem [shape: f32[1,8], index: 2, kind: input, shape index: {}]
  %s3 = inlined_call_operand.vmem [shape: bf16[2,16,16,8], index: 3, kind: output, shape index: {}]
  %s4 = sld [smem:[#allocation0]]
  $region131: #{_lambda_.2} parent=0
    _
  %s6 = ssub.s32 1, %s4
  %s7 = scalar_select 0, %s6, %s4
  $region1: #{_lambda_.2} parent=0
    #allocation3 [shape = 'u8[24576]{0}', space=vmem, size = 0x6000, scoped, tag = 'input window, operand 0']
    #allocation4 [shape = 'u8[16384]{0}', space=vmem, size = 0x4000, scoped, tag = 'output window, operand 0']
    loop: start=0, step=1, limit=50
    $region2: #{_lambda_.2} parent=1 // loop_pre_header
      _
    $region3: #{_lambda_.2} parent=1 // loop_header
      %s9 = sphi 0, %s13
      %p10 = scmp.ge.s32.totalorder %s9, 50
      %s16 = sphi 0, %s35
      %s17 = sphi 0, %s31
      %s18 = sphi 0, %s27
      %s19 = sphi 0, %s16
      %s20 = sphi 0, %s17
      %s21 = sphi 0, %s18
      %s22 = sphi 0, %s19
      %s23 = sphi 0, %s20
      %s24 = sphi 0, %s21
      %s42 = sphi 0, %s44
      %s45 = sphi 0, %s42
      %s46 = sphi 0, %s45
      %s62 = sphi 0, %s46
      %s68 = sphi 0, %s70
      %s71 = sphi 0, %s68
      %s72 = sphi 0, %s71
      %s88 = sphi 0, %s72
      %s92 = sphi 0, %s92
      %s94 = sphi 0, %s92
      %s95 = sphi 0, %s94
      %s109 = sphi 0, %s95
      %s117 = sphi 0, %s119
      %s120 = sphi 0, %s117
      %s121 = sphi 0, %s120
      %s137 = sphi 0, %s121
    $region4: #{_lambda_.2} parent=1 // loop_header_branch
      %12 = sbr.rel (%p10) target = $region8
    $region5: #{_lambda_.2} parent=1 // loop_body
      %s14 = ssub.s32 %s9, 1
      %s15 = ssub.s32 %s9, 2
      %s25 = sadd.s32 1, %s18
      %p26 = scmp.ge.s32.totalorder %s25, 3
      %s27 = scalar_select %p26, 0, %s25
      %s28 = sadd.s32 1, %s17
      %s29 = scalar_select %p26, %s28, %s17
      %p30 = scmp.ge.s32.totalorder %s29, 16
      %s31 = scalar_select %p30, 0, %s29
      %s32 = sadd.s32 1, %s16
      %s33 = scalar_select %p30, %s32, %s16
      %p34 = scmp.ge.s32.totalorder %s33, 1
      %s35 = scalar_select %p34, 0, %s33
      %s36 = sadd.s32 %s17, %s18
      %s37 = sadd.s32 %s31, %s27
      %s38 = ssub.s32 %s16, %s35
      %s39 = ssub.s32 %s36, %s37
      %s40 = sor.u32 %s38, %s39
      %p41 = scmp.eq.s32.totalorder %s40, 0
      %s43 = sadd.s32 %s42, 1
      %s44 = scalar_select %p41, %s42, %s43
      %p47 = pneg %p41
      %p48 = scmp.eq.s32.totalorder %s9, 47
      %p49 = por %p47, %p48
      %p50 = scmp.ne.s32.totalorder %s42, %s45
      %p51 = scmp.eq.s32.totalorder %s9, 0
      %p52 = por %p50, %p51
      %p53 = scmp.ne.s32.totalorder %s42, %s45
      %p54 = scmp.eq.s32.totalorder %s14, 47
      %p55 = por %p53, %p54
      %p56 = scmp.ne.s32.totalorder %s45, %s46
      %p57 = scmp.eq.s32.totalorder %s14, 0
      %p58 = por %p56, %p57
      %p59 = scmp.ne.s32.totalorder %s45, %s46
      %p60 = scmp.eq.s32.totalorder %s15, 47
      %p61 = por %p59, %p60
      %p63 = scmp.ne.s32.totalorder %s46, %s62
      %p64 = scmp.eq.s32.totalorder %s15, 0
      %p65 = por %p63, %p64
      %s66 = ssub.s32 %s18, %s27
      %p67 = scmp.eq.s32.totalorder %s66, 0
      %s69 = sadd.s32 %s68, 1
      %s70 = scalar_select %p67, %s68, %s69
      %p73 = pneg %p67
      %p74 = scmp.eq.s32.totalorder %s9, 47
      %p75 = por %p73, %p74
      %p76 = scmp.ne.s32.totalorder %s68, %s71
      %p77 = scmp.eq.s32.totalorder %s9, 0
      %p78 = por %p76, %p77
      %p79 = scmp.ne.s32.totalorder %s68, %s71
      %p80 = scmp.eq.s32.totalorder %s14, 47
      %p81 = por %p79, %p80
      %p82 = scmp.ne.s32.totalorder %s71, %s72
      %p83 = scmp.eq.s32.totalorder %s14, 0
      %p84 = por %p82, %p83
      %p85 = scmp.ne.s32.totalorder %s71, %s72
      %p86 = scmp.eq.s32.totalorder %s15, 47
      %p87 = por %p85, %p86
      %p89 = scmp.ne.s32.totalorder %s72, %s88
      %p90 = scmp.eq.s32.totalorder %s15, 0
      %p91 = por %p89, %p90
      %s93 = sadd.s32 %s92, 1
      %p96 = scmp.eq.s32.totalorder %s9, 47
      %p97 = scmp.ne.s32.totalorder %s92, %s94
      %p98 = scmp.eq.s32.totalorder %s9, 0
      %p99 = por %p97, %p98
      %p100 = scmp.ne.s32.totalorder %s92, %s94
      %p101 = scmp.eq.s32.totalorder %s14, 47
      %p102 = por %p100, %p101
      %p103 = scmp.ne.s32.totalorder %s94, %s95
      %p104 = scmp.eq.s32.totalorder %s14, 0
      %p105 = por %p103, %p104
      %p106 = scmp.ne.s32.totalorder %s94, %s95
      %p107 = scmp.eq.s32.totalorder %s15, 47
      %p108 = por %p106, %p107
      %p110 = scmp.ne.s32.totalorder %s95, %s109
      %p111 = scmp.eq.s32.totalorder %s15, 0
      %p112 = por %p110, %p111
      %s113 = ssub.s32 %s16, %s35
      %s114 = ssub.s32 %s17, %s31
      %s115 = sor.u32 %s113, %s114
      %p116 = scmp.eq.s32.totalorder %s115, 0
      %s118 = sadd.s32 %s117, 1
      %s119 = scalar_select %p116, %s117, %s118
      %p122 = pneg %p116
      %p123 = scmp.eq.s32.totalorder %s9, 47
      %p124 = por %p122, %p123
      %p125 = scmp.ne.s32.totalorder %s117, %s120
      %p126 = scmp.eq.s32.totalorder %s9, 0
      %p127 = por %p125, %p126
      %p128 = scmp.ne.s32.totalorder %s117, %s120
      %p129 = scmp.eq.s32.totalorder %s14, 47
      %p130 = por %p128, %p129
      %p131 = scmp.ne.s32.totalorder %s120, %s121
      %p132 = scmp.eq.s32.totalorder %s14, 0
      %p133 = por %p131, %p132
      %p134 = scmp.ne.s32.totalorder %s120, %s121
      %p135 = scmp.eq.s32.totalorder %s15, 47
      %p136 = por %p134, %p135
      %p138 = scmp.ne.s32.totalorder %s121, %s137
      %p139 = scmp.eq.s32.totalorder %s15, 0
      %p140 = por %p138, %p139
      %p141 = scmp.le.s32.totalorder 1, %s9
      %p142 = scmp.lt.s32.totalorder %s9, 49
      %p143 = pnand %p141, %p142
      %p144 = pneg %p143
      // Predicated region
      $region9: #{_lambda_.2} parent=5 // pred_check
        _
      $region10: #{_lambda_.2} parent=5 // pred_check_branch
        %146 = sbr.rel (%p143) target = $region12
      $region11: #{_lambda_.2} parent=5 // pred_region
        %s147 = ssub.s32 %s9, 1
        // Predicated region
        $region13: #{_lambda_.2} parent=11 // pred_check
          %p148 = pneg %p105
        $region14: #{_lambda_.2} parent=11 // pred_check_branch
          %150 = sbr.rel (%p148) target = $region16
        $region15: #{_lambda_.2} parent=11 // pred_region
          _
        $region16: #{_lambda_.2} parent=11 // pred_fallthru
          _
      $region12: #{_lambda_.2} parent=5 // pred_fallthru
        _
      %p151 = scmp.lt.s32.totalorder %s9, 48
      // Predicated region
      $region17: #{_lambda_.2} parent=5 // pred_check
        %p152 = pneg %p151
      $region18: #{_lambda_.2} parent=5 // pred_check_branch
        %154 = sbr.rel (%p152) target = $region20
      $region19: #{_lambda_.2} parent=5 // pred_region
        // Predicated region
        $region21: #{_lambda_.2} parent=19 // pred_check
          %p155 = pneg %p52
        $region22: #{_lambda_.2} parent=19 // pred_check_branch
          %157 = sbr.rel (%p155) target = $region24
        $region23: #{_lambda_.2} parent=19 // pred_region
          %s158 = sand.u32 %s42, 1
          %s159 = sand.u32 %s42, 1
          %s160 = smul.addr %s159, 24
          %s161 = scalar_lea.vmem [#allocation3], %s160
          %s162 = sadd.s32 %s17, %s18
          %s163 = smul.u32 2, %s16
          %s164 = smul.addr %s162, 3
          %s165 = smul.addr %s163, 54
          %s166 = sadd.s32 %s164, %s165
          %s167 = smul.addr %s166, 4
          %s168 = scalar_lea.vmem %s0, %s167
          // Predicated region
          $region25: #{_lambda_.2} parent=23 // pred_check
            _
          $region26: #{_lambda_.2} parent=23 // pred_check_branch
            %170 = sbr.rel (0) target = $region28
          $region27: #{_lambda_.2} parent=23 // pred_region
            // Predicated region
            $region29: #{_lambda_.2} parent=27 // pred_check
              _
            $region30: #{_lambda_.2} parent=27 // pred_check_branch
              %172 = sbr.rel target = $region32
            $region31: #{_lambda_.2} parent=27 // pred_region
              // Predicated region
              $region44: #{_lambda_.2} parent=31 // pred_check
                _
              $region45: #{_lambda_.2} parent=31 // pred_check_branch
                %197 = sbr.rel (0) target = $region47
              $region46: #{_lambda_.2} parent=31 // pred_region
                loop: start=0, step=1, limit=1
                $region48: #{_lambda_.2} parent=46 // loop_pre_header
                  _
                $region49: #{_lambda_.2} parent=46 // loop_header
                  %s199 = sphi 0, %s203
                  %p200 = scmp.ge.s32.totalorder %s199, 1
                  %s204 = sphi %s168, %s168
                  %s205 = sphi %s161, %s161
                $region50: #{_lambda_.2} parent=46 // loop_header_branch
                  %202 = sbr.rel (%p200) target = $region54
                $region51: #{_lambda_.2} parent=46 // loop_body
                  _
                $region52: #{_lambda_.2} parent=46 // loop_footer
                  %s203 = sadd.s32 1, %s199
                $region53: #{_lambda_.2} parent=46 // loop_footer_branch
                  %198 = sbr.rel target = $region49
                $region54: #{_lambda_.2} parent=46 // loop_exit
                  _
                loop: start=0, step=1, limit=1
                $region55: #{_lambda_.2} parent=46 // loop_pre_header
                  _
                $region56: #{_lambda_.2} parent=46 // loop_header
                  %s208 = sphi 0, %s212
                  %p209 = scmp.ge.s32.totalorder %s208, 1
                  %s213 = sphi %s168, %s168
                  %s214 = sphi %s161, %s161
                $region57: #{_lambda_.2} parent=46 // loop_header_branch
                  %211 = sbr.rel (%p209) target = $region61
                $region58: #{_lambda_.2} parent=46 // loop_body
                  %v215 = vld [vmem:[%s213] sm:$0xf]
                  %216 = vst [vmem:[%s214] sm:$0xf] %v215
                  %v217 = vld [vmem:[%s213 + $0x4] sm:$0xf]
                  %218 = vst [vmem:[%s214 + $0x4] sm:$0xf] %v217
                  %v219 = vld [vmem:[%s213 + $0x8] sm:$0xf]
                  %220 = vst [vmem:[%s214 + $0x8] sm:$0xf] %v219
                  %v221 = vld [vmem:[%s213 + $0xd8] sm:$0xf]
                  %222 = vst [vmem:[%s214 + $0xc] sm:$0xf] %v221
                  %v223 = vld [vmem:[%s213 + $0xdc] sm:$0xf]
                  %224 = vst [vmem:[%s214 + $0x10] sm:$0xf] %v223
                  %v225 = vld [vmem:[%s213 + $0xe0] sm:$0xf]
                  %226 = vst [vmem:[%s214 + $0x14] sm:$0xf] %v225
                $region59: #{_lambda_.2} parent=46 // loop_footer
                  %s212 = sadd.s32 1, %s208
                $region60: #{_lambda_.2} parent=46 // loop_footer_branch
                  %207 = sbr.rel target = $region56
                $region61: #{_lambda_.2} parent=46 // loop_exit
                  _
              $region47: #{_lambda_.2} parent=31 // pred_fallthru
                _
            $region32: #{_lambda_.2} parent=27 // pred_fallthru
              _
            // Predicated region
            $region33: #{_lambda_.2} parent=27 // pred_check
              _
            $region34: #{_lambda_.2} parent=27 // pred_check_branch
              %174 = sbr.rel (0) target = $region36
            $region35: #{_lambda_.2} parent=27 // pred_region
              loop: start=0, step=1, limit=1
              $region37: #{_lambda_.2} parent=35 // loop_pre_header
                _
              $region38: #{_lambda_.2} parent=35 // loop_header
                %s177 = sphi 0, %s181
                %p178 = scmp.ge.s32.totalorder %s177, 1
                %s182 = sphi %s168, %s168
                %s183 = sphi %s161, %s161
              $region39: #{_lambda_.2} parent=35 // loop_header_branch
                %180 = sbr.rel (%p178) target = $region43
              $region40: #{_lambda_.2} parent=35 // loop_body
                %v184 = vld [vmem:[%s182] sm:$0xf]
                %185 = vst [vmem:[%s183] sm:$0xf] %v184
                %v186 = vld [vmem:[%s182 + $0x4] sm:$0xf]
                %187 = vst [vmem:[%s183 + $0x4] sm:$0xf] %v186
                %v188 = vld [vmem:[%s182 + $0x8] sm:$0xf]
                %189 = vst [vmem:[%s183 + $0x8] sm:$0xf] %v188
                %v190 = vld [vmem:[%s182 + $0xd8] sm:$0xf]
                %191 = vst [vmem:[%s183 + $0xc] sm:$0xf] %v190
                %v192 = vld [vmem:[%s182 + $0xdc] sm:$0xf]
                %193 = vst [vmem:[%s183 + $0x10] sm:$0xf] %v192
                %v194 = vld [vmem:[%s182 + $0xe0] sm:$0xf]
                %195 = vst [vmem:[%s183 + $0x14] sm:$0xf] %v194
              $region41: #{_lambda_.2} parent=35 // loop_footer
                %s181 = sadd.s32 1, %s177
              $region42: #{_lambda_.2} parent=35 // loop_footer_branch
                %176 = sbr.rel target = $region38
              $region43: #{_lambda_.2} parent=35 // loop_exit
                _
            $region36: #{_lambda_.2} parent=27 // pred_fallthru
              _
          $region28: #{_lambda_.2} parent=23 // pred_fallthru
            _
          %227 = vnop
        $region24: #{_lambda_.2} parent=19 // pred_fallthru
          _
        // Predicated region
        $region62: #{_lambda_.2} parent=19 // pred_check
          %p228 = pneg %p78
        $region63: #{_lambda_.2} parent=19 // pred_check_branch
          %230 = sbr.rel (%p228) target = $region65
        $region64: #{_lambda_.2} parent=19 // pred_region
          %p231 = scmp.lt.s32.totalorder %s18, 2
          %s232 = scalar_select %p231, %s18, 2
          %s233 = smul.addr %s232, 3
          %s234 = smul.addr %s233, 2
          %s235 = scalar_lea.vmem %s1, %s234
        $region65: #{_lambda_.2} parent=19 // pred_fallthru
          _
      $region20: #{_lambda_.2} parent=5 // pred_fallthru
        _
      %p236 = scmp.le.s32.totalorder 1, %s9
      %p237 = scmp.lt.s32.totalorder %s9, 49
      %p238 = pnand %p236, %p237
      %p239 = pneg %p238
      // Predicated region
      $region66: #{_lambda_.2} parent=5 // pred_check
        _
      $region67: #{_lambda_.2} parent=5 // pred_check_branch
        %241 = sbr.rel (%p238) target = $region69
      $region68: #{_lambda_.2} parent=5 // pred_region
        %s242 = ssub.s32 %s9, 1
        %s243 = sand.u32 %s45, 1
        %s244 = sand.u32 %s45, 1
        %s245 = smul.addr %s244, 24
        %s246 = scalar_lea.vmem [#allocation3], %s245
        // Predicated region
        $region70: #{_lambda_.2} parent=68 // pred_check
          %p247 = pneg %p58
        $region71: #{_lambda_.2} parent=68 // pred_check_branch
          %249 = sbr.rel (%p247) target = $region73
        $region72: #{_lambda_.2} parent=68 // pred_region
          _
        $region73: #{_lambda_.2} parent=68 // pred_fallthru
          _
        %s250 = sand.u32 %s45, 1
        %s251 = sand.u32 %s45, 1
        %s252 = smul.addr %s251, 24
        %s253 = scalar_lea.vmem [#allocation3], %s252
        %p254 = pneg %p58
        %p255 = pneg %p55
        %p256 = scmp.lt.s32.totalorder %s21, 2
        %s257 = scalar_select %p256, %s21, 2
        %s258 = smul.addr %s257, 3
        %s259 = smul.addr %s258, 2
        %s260 = scalar_lea.vmem %s1, %s259
        %p261 = pneg %p84
        %p262 = pneg %p81
        %p263 = pneg %p105
        %p264 = pneg %p102
        %p265 = pneg %p133
        %p266 = pneg %p130
        %s267 = sand.u32 %s120, 1
        %s268 = sand.u32 %s120, 1
        %s269 = smul.addr %s268, 16
        %s270 = scalar_lea.vmem [#allocation4], %s269
        %s271 = sadd.s32 %s20, %s21
        %s272 = smul.u32 2, %s19
        %p273 = scmp.lt.s32.totalorder %s21, 2
        %s274 = scalar_select %p273, %s21, 2
        %s275 = smul.addr %s274, 3
        %s276 = smul.addr %s275, 2
        %s277 = scalar_lea.vmem %s1, %s276
        %s278 = smul.u32 2, %s19
        %p280 = scmp.eq.s32.totalorder %s21, 0
        // Predicated region
        $region74: #{_lambda_.2} parent=68 // pred_check
          %p281 = pneg %p280
        $region75: #{_lambda_.2} parent=68 // pred_check_branch
          %283 = sbr.rel (%p281) target = $region77
        $region76: #{_lambda_.2} parent=68 // pred_region
          %vm284 = vcmask 64512
          %285 = vst.msk [vmem:[#allocation2] sm:$0xff] %vm284, 0.0
          %286 = vst.msk [vmem:[#allocation2 + $0x8] sm:$0xff] %vm284, 0.0
          %287 = vst.msk [vmem:[#allocation2 + $0x10] sm:$0xff] %vm284, 0.0
          %288 = vst.msk [vmem:[#allocation2 + $0x18] sm:$0xff] %vm284, 0.0
        $region77: #{_lambda_.2} parent=68 // pred_fallthru
          _
        %v289 = vld [vmem:[%s246] sm:$0xf]
        %v290 = vld [vmem:[%s246 + $0x4] sm:$0xf]
        %v291 = vld [vmem:[%s246 + $0x8] sm:$0x1]
        %v292 = vld [vmem:[%s246 + $0xc] sm:$0xf]
        %v293 = vld [vmem:[%s246 + $0x10] sm:$0xf]
        %v294 = vld [vmem:[%s246 + $0x14] sm:$0x1]
        %v295 = vld [vmem:[%s277] sm:$0x3]
        %v296 = vld [vmem:[%s277 + $0x2] sm:$0x3]
        %v297 = vld [vmem:[%s277 + $0x4] sm:$0x3]
        %v301 = vunpack.c.l.b16 %v289
        %v302 = vunpack.c.l.b16 %v290
        %v303 = vunpack.c.l.b16 %v291
        %v304 = vpack.c.b16 %v302, %v301
        %v305 = vpack.c.b16 %v303, %v303
        %vm306 = vcmask 31744
        %v308 = vsel %vm306, %v304, 0
        %v311 = vsel %vm306, %v305, 0
        %vm313 = vcmask 1041408
        %v315 = vsel %vm313, %v295, 0
        %317 = vmatprep.subr.bf16.mxu0 0
        %318 = vmatpush1.bf16.msra.mxu0 %v315
        %319 = vmatprep.subr.bf16.mxu0 0
        %320 = vmatpush1.bf16.msra.mxu0 0
        %321 = vmatprep.subr.bf16.mxu0 0
        %322 = vmatpush1.bf16.msra.mxu0 0
        %323 = vmatprep.subr.bf16.mxu0 0
        %324 = vmatpush1.bf16.msra.mxu0 0
        %325 = vmatprep.subr.bf16.mxu0 0
        %326 = vmatpush1.bf16.msra.mxu0 0
        %327 = vmatprep.subr.bf16.mxu0 0
        %328 = vmatpush1.bf16.msra.mxu0 0
        %329 = vmatprep.subr.bf16.mxu0 0
        %330 = vmatpush1.bf16.msra.mxu0 0
        %331 = vmatprep.subr.bf16.mxu0 0
        %332 = vmatpush1.bf16.msra.mxu0 0
        %333 = vmatprep.subr.bf16.mxu0 0
        %334 = vmatpush1.bf16.msra.mxu0 0
        %335 = vmatprep.subr.bf16.mxu0 0
        %336 = vmatpush1.bf16.msra.mxu0 0
        %337 = vmatprep.subr.bf16.mxu0 0
        %338 = vmatpush1.bf16.msra.mxu0 0
        %339 = vmatprep.subr.bf16.mxu0 0
        %340 = vmatpush1.bf16.msra.mxu0 0
        %341 = vmatprep.subr.bf16.mxu0 0
        %342 = vmatpush1.bf16.msra.mxu0 0
        %343 = vmatprep.subr.bf16.mxu0 0
        %344 = vmatpush1.bf16.msra.mxu0 0
        %345 = vmatprep.subr.bf16.mxu0 0
        %346 = vmatpush1.bf16.msra.mxu0 0
        %347 = vmatprep.subr.bf16.mxu0 0
        %348 = vmatpush1.bf16.msra.mxu0 0
        %349 = vmatprep.mubr.bf16.mxu0 0
        %350 = vmatmul.mubr.bf16.gmra.mrb[0].mxu0 %v308
        %v351 = vpop.f32.mrb[0].mxu0
        %v352 = vadd.f32 0.0, %v351
        %v353 = vpop.f32.mrb[0].mxu0
        %v354 = vpop.f32.mrb[0].mxu0
        %v355 = vadd.f32 0.0, %v354
        %v356 = vpop.f32.mrb[0].mxu0
        %357 = vmatprep.mubr.bf16.mxu0 0
        %358 = vmatmul.mubr.bf16.gmra.mrb[0].mxu0 %v311
        %v359 = vpop.f32.mrb[0].mxu0
        %v360 = vpop.f32.mrb[0].mxu0
        %v361 = vpop.f32.mrb[0].mxu0
        %v362 = vpop.f32.mrb[0].mxu0
        %363 = vdwg.mxu0
        %v364 = vld [vmem:[#allocation2] sm:$0xff]
        %v365 = vld [vmem:[#allocation2 + $0x8] sm:$0xff]
        %v366 = vadd.f32 %v364, %v352
        %v367 = vadd.f32 %v365, %v355
        %vm368 = vcmask 64512
        %369 = vst.msk [vmem:[#allocation2] sm:$0xff] %vm368, %v366
        %370 = vst.msk [vmem:[#allocation2 + $0x8] sm:$0xff] %vm368, %v367
        %v374 = vunpack.c.l.b16 %v292
        %v375 = vunpack.c.l.b16 %v293
        %v376 = vunpack.c.l.b16 %v294
        %v377 = vpack.c.b16 %v375, %v374
        %v378 = vpack.c.b16 %v376, %v376
        %v380 = vsel %vm306, %v377, 0
        %v383 = vsel %vm306, %v378, 0
        %385 = vmatprep.subr.bf16.mxu0 0
        %386 = vmatpush1.bf16.msra.mxu0 %v315
        %387 = vmatprep.subr.bf16.mxu0 0
        %388 = vmatpush1.bf16.msra.mxu0 0
        %389 = vmatprep.subr.bf16.mxu0 0
        %390 = vmatpush1.bf16.msra.mxu0 0
        %391 = vmatprep.subr.bf16.mxu0 0
        %392 = vmatpush1.bf16.msra.mxu0 0
        %393 = vmatprep.subr.bf16.mxu0 0
        %394 = vmatpush1.bf16.msra.mxu0 0
        %395 = vmatprep.subr.bf16.mxu0 0
        %396 = vmatpush1.bf16.msra.mxu0 0
        %397 = vmatprep.subr.bf16.mxu0 0
        %398 = vmatpush1.bf16.msra.mxu0 0
        %399 = vmatprep.subr.bf16.mxu0 0
        %400 = vmatpush1.bf16.msra.mxu0 0
        %401 = vmatprep.subr.bf16.mxu0 0
        %402 = vmatpush1.bf16.msra.mxu0 0
        %403 = vmatprep.subr.bf16.mxu0 0
        %404 = vmatpush1.bf16.msra.mxu0 0
        %405 = vmatprep.subr.bf16.mxu0 0
        %406 = vmatpush1.bf16.msra.mxu0 0
        %407 = vmatprep.subr.bf16.mxu0 0
        %408 = vmatpush1.bf16.msra.mxu0 0
        %409 = vmatprep.subr.bf16.mxu0 0
        %410 = vmatpush1.bf16.msra.mxu0 0
        %411 = vmatprep.subr.bf16.mxu0 0
        %412 = vmatpush1.bf16.msra.mxu0 0
        %413 = vmatprep.subr.bf16.mxu0 0
        %414 = vmatpush1.bf16.msra.mxu0 0
        %415 = vmatprep.subr.bf16.mxu0 0
        %416 = vmatpush1.bf16.msra.mxu0 0
        %417 = vmatprep.mubr.bf16.mxu0 0
        %418 = vmatmul.mubr.bf16.gmra.mrb[0].mxu0 %v380
        %v419 = vpop.f32.mrb[0].mxu0
        %v420 = vadd.f32 0.0, %v419
        %v421 = vpop.f32.mrb[0].mxu0
        %v422 = vpop.f32.mrb[0].mxu0
        %v423 = vadd.f32 0.0, %v422
        %v424 = vpop.f32.mrb[0].mxu0
        %425 = vmatprep.mubr.bf16.mxu0 0
        %426 = vmatmul.mubr.bf16.gmra.mrb[0].mxu0 %v383
        %v427 = vpop.f32.mrb[0].mxu0
        %v428 = vpop.f32.mrb[0].mxu0
        %v429 = vpop.f32.mrb[0].mxu0
        %v430 = vpop.f32.mrb[0].mxu0
        %431 = vdwg.mxu0
        %s432 = scalar_lea.vmem [#allocation2], 16
        %v433 = vld [vmem:[%s432] sm:$0xff]
        %v434 = vld [vmem:[%s432 + $0x8] sm:$0xff]
        %v435 = vadd.f32 %v433, %v420
        %v436 = vadd.f32 %v434, %v423
        %437 = vst.msk [vmem:[%s432] sm:$0xff] %vm368, %v435
        %438 = vst.msk [vmem:[%s432 + $0x8] sm:$0xff] %vm368, %v436
        %v440 = vsel %vm313, %v296, 0
        %442 = vmatprep.subr.bf16.mxu0 0
        %443 = vmatpush1.bf16.msra.mxu0 %v440
        %444 = vmatprep.subr.bf16.mxu0 0
        %445 = vmatpush1.bf16.msra.mxu0 0
        %446 = vmatprep.subr.bf16.mxu0 0
        %447 = vmatpush1.bf16.msra.mxu0 0
        %448 = vmatprep.subr.bf16.mxu0 0
        %449 = vmatpush1.bf16.msra.mxu0 0
        %450 = vmatprep.subr.bf16.mxu0 0
        %451 = vmatpush1.bf16.msra.mxu0 0
        %452 = vmatprep.subr.bf16.mxu0 0
        %453 = vmatpush1.bf16.msra.mxu0 0
        %454 = vmatprep.subr.bf16.mxu0 0
        %455 = vmatpush1.bf16.msra.mxu0 0
        %456 = vmatprep.subr.bf16.mxu0 0
        %457 = vmatpush1.bf16.msra.mxu0 0
        %458 = vmatprep.subr.bf16.mxu0 0
        %459 = vmatpush1.bf16.msra.mxu0 0
        %460 = vmatprep.subr.bf16.mxu0 0
        %461 = vmatpush1.bf16.msra.mxu0 0
        %462 = vmatprep.subr.bf16.mxu0 0
        %463 = vmatpush1.bf16.msra.mxu0 0
        %464 = vmatprep.subr.bf16.mxu0 0
        %465 = vmatpush1.bf16.msra.mxu0 0
        %466 = vmatprep.subr.bf16.mxu0 0
        %467 = vmatpush1.bf16.msra.mxu0 0
        %468 = vmatprep.subr.bf16.mxu0 0
        %469 = vmatpush1.bf16.msra.mxu0 0
        %470 = vmatprep.subr.bf16.mxu0 0
        %471 = vmatpush1.bf16.msra.mxu0 0
        %472 = vmatprep.subr.bf16.mxu0 0
        %473 = vmatpush1.bf16.msra.mxu0 0
        %474 = vmatprep.mubr.bf16.mxu0 0
        %475 = vmatmul.mubr.bf16.gmra.mrb[0].mxu0 %v308
        %v476 = vpop.f32.mrb[0].mxu0
        %v477 = vadd.f32 0.0, %v476
        %v478 = vpop.f32.mrb[0].mxu0
        %v479 = vpop.f32.mrb[0].mxu0
        %v480 = vadd.f32 0.0, %v479
        %v481 = vpop.f32.mrb[0].mxu0
        %482 = vmatprep.mubr.bf16.mxu0 0
        %483 = vmatmul.mubr.bf16.gmra.mrb[0].mxu0 %v311
        %v484 = vpop.f32.mrb[0].mxu0
        %v485 = vadd.f32 0.0, %v484
        %v486 = vpop.f32.mrb[0].mxu0
        %v487 = vpop.f32.mrb[0].mxu0
        %v488 = vpop.f32.mrb[0].mxu0
        %489 = vdwg.mxu0
        %v490 = vld [vmem:[#allocation2] sm:$0xff]
        %v491 = vld [vmem:[#allocation2 + $0x8] sm:$0xff]
        %vm495 = vcmask 1046528
        %v496 = vrot.slane %v477, 1
        %v497 = vrot.slane %v480, 1
        %v498 = vsel %vm495, %v496, %v497
        %v499 = vrot.slane %v485, 1
        %v500 = vsel %vm495, %v497, %v499
        %v503 = vadd.f32 %v490, %v498
        %v504 = vadd.f32 %v491, %v500
        %505 = vst.msk [vmem:[#allocation2] sm:$0xff] %vm368, %v503
        %506 = vst.msk [vmem:[#allocation2 + $0x8] sm:$0xff] %vm368, %v504
        %507 = vmatprep.subr.bf16.mxu0 0
        %508 = vmatpush1.bf16.msra.mxu0 %v440
        %509 = vmatprep.subr.bf16.mxu0 0
        %510 = vmatpush1.bf16.msra.mxu0 0
        %511 = vmatprep.subr.bf16.mxu0 0
        %512 = vmatpush1.bf16.msra.mxu0 0
        %513 = vmatprep.subr.bf16.mxu0 0
        %514 = vmatpush1.bf16.msra.mxu0 0
        %515 = vmatprep.subr.bf16.mxu0 0
        %516 = vmatpush1.bf16.msra.mxu0 0
        %517 = vmatprep.subr.bf16.mxu0 0
        %518 = vmatpush1.bf16.msra.mxu0 0
        %519 = vmatprep.subr.bf16.mxu0 0
        %520 = vmatpush1.bf16.msra.mxu0 0
        %521 = vmatprep.subr.bf16.mxu0 0
        %522 = vmatpush1.bf16.msra.mxu0 0
        %523 = vmatprep.subr.bf16.mxu0 0
        %524 = vmatpush1.bf16.msra.mxu0 0
        %525 = vmatprep.subr.bf16.mxu0 0
        %526 = vmatpush1.bf16.msra.mxu0 0
        %527 = vmatprep.subr.bf16.mxu0 0
        %528 = vmatpush1.bf16.msra.mxu0 0
        %529 = vmatprep.subr.bf16.mxu0 0
        %530 = vmatpush1.bf16.msra.mxu0 0
        %531 = vmatprep.subr.bf16.mxu0 0
        %532 = vmatpush1.bf16.msra.mxu0 0
        %533 = vmatprep.subr.bf16.mxu0 0
        %534 = vmatpush1.bf16.msra.mxu0 0
        %535 = vmatprep.subr.bf16.mxu0 0
        %536 = vmatpush1.bf16.msra.mxu0 0
        %537 = vmatprep.subr.bf16.mxu0 0
        %538 = vmatpush1.bf16.msra.mxu0 0
        %539 = vmatprep.mubr.bf16.mxu0 0
        %540 = vmatmul.mubr.bf16.gmra.mrb[0].mxu0 %v380
        %v541 = vpop.f32.mrb[0].mxu0
        %v542 = vadd.f32 0.0, %v541
        %v543 = vpop.f32.mrb[0].mxu0
        %v544 = vpop.f32.mrb[0].mxu0
        %v545 = vadd.f32 0.0, %v544
        %v546 = vpop.f32.mrb[0].mxu0
        %547 = vmatprep.mubr.bf16.mxu0 0
        %548 = vmatmul.mubr.bf16.gmra.mrb[0].mxu0 %v383
        %v549 = vpop.f32.mrb[0].mxu0
        %v550 = vadd.f32 0.0, %v549
        %v551 = vpop.f32.mrb[0].mxu0
        %v552 = vpop.f32.mrb[0].mxu0
        %v553 = vpop.f32.mrb[0].mxu0
        %554 = vdwg.mxu0
        %v555 = vld [vmem:[%s432] sm:$0xff]
        %v556 = vld [vmem:[%s432 + $0x8] sm:$0xff]
        %v560 = vrot.slane %v542, 1
        %v561 = vrot.slane %v545, 1
        %v562 = vsel %vm495, %v560, %v561
        %v563 = vrot.slane %v550, 1
        %v564 = vsel %vm495, %v561, %v563
        %v567 = vadd.f32 %v555, %v562
        %v568 = vadd.f32 %v556, %v564
        %569 = vst.msk [vmem:[%s432] sm:$0xff] %vm368, %v567
        %570 = vst.msk [vmem:[%s432 + $0x8] sm:$0xff] %vm368, %v568
        %v572 = vsel %vm313, %v297, 0
        %574 = vmatprep.subr.bf16.mxu0 0
        %575 = vmatpush1.bf16.msra.mxu0 %v572
        %576 = vmatprep.subr.bf16.mxu0 0
        %577 = vmatpush1.bf16.msra.mxu0 0
        %578 = vmatprep.subr.bf16.mxu0 0
        %579 = vmatpush1.bf16.msra.mxu0 0
        %580 = vmatprep.subr.bf16.mxu0 0
        %581 = vmatpush1.bf16.msra.mxu0 0
        %582 = vmatprep.subr.bf16.mxu0 0
        %583 = vmatpush1.bf16.msra.mxu0 0
        %584 = vmatprep.subr.bf16.mxu0 0
        %585 = vmatpush1.bf16.msra.mxu0 0
        %586 = vmatprep.subr.bf16.mxu0 0
        %587 = vmatpush1.bf16.msra.mxu0 0
        %588 = vmatprep.subr.bf16.mxu0 0
        %589 = vmatpush1.bf16.msra.mxu0 0
        %590 = vmatprep.subr.bf16.mxu0 0
        %591 = vmatpush1.bf16.msra.mxu0 0
        %592 = vmatprep.subr.bf16.mxu0 0
        %593 = vmatpush1.bf16.msra.mxu0 0
        %594 = vmatprep.subr.bf16.mxu0 0
        %595 = vmatpush1.bf16.msra.mxu0 0
        %596 = vmatprep.subr.bf16.mxu0 0
        %597 = vmatpush1.bf16.msra.mxu0 0
        %598 = vmatprep.subr.bf16.mxu0 0
        %599 = vmatpush1.bf16.msra.mxu0 0
        %600 = vmatprep.subr.bf16.mxu0 0
        %601 = vmatpush1.bf16.msra.mxu0 0
        %602 = vmatprep.subr.bf16.mxu0 0
        %603 = vmatpush1.bf16.msra.mxu0 0
        %604 = vmatprep.subr.bf16.mxu0 0
        %605 = vmatpush1.bf16.msra.mxu0 0
        %606 = vmatprep.mubr.bf16.mxu0 0
        %607 = vmatmul.mubr.bf16.gmra.mrb[0].mxu0 %v308
        %v608 = vpop.f32.mrb[0].mxu0
        %v609 = vadd.f32 0.0, %v608
        %v610 = vpop.f32.mrb[0].mxu0
        %v611 = vpop.f32.mrb[0].mxu0
        %v612 = vadd.f32 0.0, %v611
        %v613 = vpop.f32.mrb[0].mxu0
        %614 = vmatprep.mubr.bf16.mxu0 0
        %615 = vmatmul.mubr.bf16.gmra.mrb[0].mxu0 %v311
        %v616 = vpop.f32.mrb[0].mxu0
        %v617 = vadd.f32 0.0, %v616
        %v618 = vpop.f32.mrb[0].mxu0
        %v619 = vpop.f32.mrb[0].mxu0
        %v620 = vpop.f32.mrb[0].mxu0
        %621 = vdwg.mxu0
        %v622 = vld [vmem:[#allocation2] sm:$0xff]
        %v623 = vld [vmem:[#allocation2 + $0x8] sm:$0xff]
        %vm627 = vcmask 1045504
        %v628 = vrot.slane %v609, 2
        %v629 = vrot.slane %v612, 2
        %v630 = vsel %vm627, %v628, %v629
        %v631 = vrot.slane %v617, 2
        %v632 = vsel %vm627, %v629, %v631
        %v635 = vadd.f32 %v622, %v630
        %v636 = vadd.f32 %v623, %v632
        %637 = vst.msk [vmem:[#allocation2] sm:$0xff] %vm368, %v635
        %638 = vst.msk [vmem:[#allocation2 + $0x8] sm:$0xff] %vm368, %v636
        %639 = vmatprep.subr.bf16.mxu0 0
        %640 = vmatpush1.bf16.msra.mxu0 %v572
        %641 = vmatprep.subr.bf16.mxu0 0
        %642 = vmatpush1.bf16.msra.mxu0 0
        %643 = vmatprep.subr.bf16.mxu0 0
        %644 = vmatpush1.bf16.msra.mxu0 0
        %645 = vmatprep.subr.bf16.mxu0 0
        %646 = vmatpush1.bf16.msra.mxu0 0
        %647 = vmatprep.subr.bf16.mxu0 0
        %648 = vmatpush1.bf16.msra.mxu0 0
        %649 = vmatprep.subr.bf16.mxu0 0
        %650 = vmatpush1.bf16.msra.mxu0 0
        %651 = vmatprep.subr.bf16.mxu0 0
        %652 = vmatpush1.bf16.msra.mxu0 0
        %653 = vmatprep.subr.bf16.mxu0 0
        %654 = vmatpush1.bf16.msra.mxu0 0
        %655 = vmatprep.subr.bf16.mxu0 0
        %656 = vmatpush1.bf16.msra.mxu0 0
        %657 = vmatprep.subr.bf16.mxu0 0
        %658 = vmatpush1.bf16.msra.mxu0 0
        %659 = vmatprep.subr.bf16.mxu0 0
        %660 = vmatpush1.bf16.msra.mxu0 0
        %661 = vmatprep.subr.bf16.mxu0 0
        %662 = vmatpush1.bf16.msra.mxu0 0
        %663 = vmatprep.subr.bf16.mxu0 0
        %664 = vmatpush1.bf16.msra.mxu0 0
        %665 = vmatprep.subr.bf16.mxu0 0
        %666 = vmatpush1.bf16.msra.mxu0 0
        %667 = vmatprep.subr.bf16.mxu0 0
        %668 = vmatpush1.bf16.msra.mxu0 0
        %669 = vmatprep.subr.bf16.mxu0 0
        %670 = vmatpush1.bf16.msra.mxu0 0
        %671 = vmatprep.mubr.bf16.mxu0 0
        %672 = vmatmul.mubr.bf16.gmra.mrb[0].mxu0 %v380
        %v673 = vpop.f32.mrb[0].mxu0
        %v674 = vadd.f32 0.0, %v673
        %v675 = vpop.f32.mrb[0].mxu0
        %v676 = vpop.f32.mrb[0].mxu0
        %v677 = vadd.f32 0.0, %v676
        %v678 = vpop.f32.mrb[0].mxu0
        %679 = vmatprep.mubr.bf16.mxu0 0
        %680 = vmatmul.mubr.bf16.gmra.mrb[0].mxu0 %v383
        %v681 = vpop.f32.mrb[0].mxu0
        %v682 = vadd.f32 0.0, %v681
        %v683 = vpop.f32.mrb[0].mxu0
        %v684 = vpop.f32.mrb[0].mxu0
        %v685 = vpop.f32.mrb[0].mxu0
        %686 = vdwg.mxu0
        %v687 = vld [vmem:[%s432] sm:$0xff]
        %v688 = vld [vmem:[%s432 + $0x8] sm:$0xff]
        %v692 = vrot.slane %v674, 2
        %v693 = vrot.slane %v677, 2
        %v694 = vsel %vm627, %v692, %v693
        %v695 = vrot.slane %v682, 2
        %v696 = vsel %vm627, %v693, %v695
        %v699 = vadd.f32 %v687, %v694
        %v700 = vadd.f32 %v688, %v696
        %701 = vst.msk [vmem:[%s432] sm:$0xff] %vm368, %v699
        %702 = vst.msk [vmem:[%s432 + $0x8] sm:$0xff] %vm368, %v700
        %p703 = scmp.eq.s32.totalorder %s21, 2
        // Predicated region
        $region78: #{_lambda_.2} parent=68 // pred_check
          %p704 = pneg %p703
        $region79: #{_lambda_.2} parent=68 // pred_check_branch
          %706 = sbr.rel (%p704) target = $region81
        $region80: #{_lambda_.2} parent=68 // pred_region
          %v707 = vld [vmem:[%s2] sm:$0x1]
          %v708 = vld [vmem:[#allocation2] sm:$0xff]
          %v709 = vld [vmem:[#allocation2 + $0x8] sm:$0xff]
          %v711 = vlaneseq
          %v712 = vshrl.u32 %v711, 7
          %v713 = vsub.s32 0, %v712
          %v714 = vrot.slane %v707, %v713
          %v716 = vadd.f32 %v708, %v714
          %v717 = vadd.f32 %v709, %v714
          %v718 = vmax.f32 %v716, 0.0
          %v719 = vmax.f32 %v717, 0.0
          %v720 = vpack.c.bf16 %v719, %v718
          %v722 = vunpack.c.l.b16 %v720
          %v723 = vunpack.c.h.b16 %v720
          %v724 = vpack.c.b16 %v722, %v722
          %v725 = vpack.c.b16 %v723, %v723
          %vm728 = vcmask 60416
          %729 = vst.msk [vmem:[%s270] sm:$0xf] %vm728, %v724
          %730 = vst.msk [vmem:[%s270 + $0x4] sm:$0xf] %vm728, %v725
          %v731 = vld [vmem:[%s432] sm:$0xff]
          %v732 = vld [vmem:[%s432 + $0x8] sm:$0xff]
          %v733 = vadd.f32 %v731, %v714
          %v734 = vadd.f32 %v732, %v714
          %v735 = vmax.f32 %v733, 0.0
          %v736 = vmax.f32 %v734, 0.0
          %v737 = vpack.c.bf16 %v736, %v735
          %v739 = vunpack.c.l.b16 %v737
          %v740 = vunpack.c.h.b16 %v737
          %v741 = vpack.c.b16 %v739, %v739
          %v742 = vpack.c.b16 %v740, %v740
          %s745 = scalar_lea.vmem %s270, 8 [#allocation4]
          %746 = vst.msk [vmem:[%s745] sm:$0xf] %vm728, %v741
          %747 = vst.msk [vmem:[%s745 + $0x4] sm:$0xf] %vm728, %v742
        $region81: #{_lambda_.2} parent=68 // pred_fallthru
          _
        %s748 = sand.u32 %s120, 1
        %s749 = sand.u32 %s120, 1
        %s750 = smul.addr %s749, 16
        %s751 = scalar_lea.vmem [#allocation4], %s750
        // Predicated region
        $region82: #{_lambda_.2} parent=68 // pred_check
          %p752 = pneg %p130
        $region83: #{_lambda_.2} parent=68 // pred_check_branch
          %754 = sbr.rel (%p752) target = $region85
        $region84: #{_lambda_.2} parent=68 // pred_region
          %s755 = smul.u32 2, %s19
          %s756 = smul.addr %s20, 2
          %s757 = smul.addr %s755, 32
          %s758 = sadd.s32 %s756, %s757
          %s759 = smul.addr %s758, 4
          %s760 = scalar_lea.vmem %s3, %s759
          // Predicated region
          $region86: #{_lambda_.2} parent=84 // pred_check
            _
          $region87: #{_lambda_.2} parent=84 // pred_check_branch
            %762 = sbr.rel (0) target = $region89
          $region88: #{_lambda_.2} parent=84 // pred_region
            // Predicated region
            $region90: #{_lambda_.2} parent=88 // pred_check
              _
            $region91: #{_lambda_.2} parent=88 // pred_check_branch
              %764 = sbr.rel target = $region93
            $region92: #{_lambda_.2} parent=88 // pred_region
              // Predicated region
              $region105: #{_lambda_.2} parent=92 // pred_check
                _
              $region106: #{_lambda_.2} parent=92 // pred_check_branch
                %785 = sbr.rel (0) target = $region108
              $region107: #{_lambda_.2} parent=92 // pred_region
                loop: start=0, step=1, limit=1
                $region109: #{_lambda_.2} parent=107 // loop_pre_header
                  _
                $region110: #{_lambda_.2} parent=107 // loop_header
                  %s787 = sphi 0, %s791
                  %p788 = scmp.ge.s32.totalorder %s787, 1
                  %s792 = sphi %s751, %s751
                  %s793 = sphi %s760, %s760
                $region111: #{_lambda_.2} parent=107 // loop_header_branch
                  %790 = sbr.rel (%p788) target = $region115
                $region112: #{_lambda_.2} parent=107 // loop_body
                  _
                $region113: #{_lambda_.2} parent=107 // loop_footer
                  %s791 = sadd.s32 1, %s787
                $region114: #{_lambda_.2} parent=107 // loop_footer_branch
                  %786 = sbr.rel target = $region110
                $region115: #{_lambda_.2} parent=107 // loop_exit
                  _
                loop: start=0, step=1, limit=1
                $region116: #{_lambda_.2} parent=107 // loop_pre_header
                  _
                $region117: #{_lambda_.2} parent=107 // loop_header
                  %s796 = sphi 0, %s800
                  %p797 = scmp.ge.s32.totalorder %s796, 1
                  %s801 = sphi %s751, %s751
                  %s802 = sphi %s760, %s760
                $region118: #{_lambda_.2} parent=107 // loop_header_branch
                  %799 = sbr.rel (%p797) target = $region122
                $region119: #{_lambda_.2} parent=107 // loop_body
                  %v803 = vld [vmem:[%s801] sm:$0xf]
                  %804 = vst [vmem:[%s802] sm:$0xf] %v803
                  %v805 = vld [vmem:[%s801 + $0x4] sm:$0xf]
                  %806 = vst [vmem:[%s802 + $0x4] sm:$0xf] %v805
                  %v807 = vld [vmem:[%s801 + $0x8] sm:$0xf]
                  %808 = vst [vmem:[%s802 + $0x80] sm:$0xf] %v807
                  %v809 = vld [vmem:[%s801 + $0xc] sm:$0xf]
                  %810 = vst [vmem:[%s802 + $0x84] sm:$0xf] %v809
                $region120: #{_lambda_.2} parent=107 // loop_footer
                  %s800 = sadd.s32 1, %s796
                $region121: #{_lambda_.2} parent=107 // loop_footer_branch
                  %795 = sbr.rel target = $region117
                $region122: #{_lambda_.2} parent=107 // loop_exit
                  _
              $region108: #{_lambda_.2} parent=92 // pred_fallthru
                _
            $region93: #{_lambda_.2} parent=88 // pred_fallthru
              _
            // Predicated region
            $region94: #{_lambda_.2} parent=88 // pred_check
              _
            $region95: #{_lambda_.2} parent=88 // pred_check_branch
              %766 = sbr.rel (0) target = $region97
            $region96: #{_lambda_.2} parent=88 // pred_region
              loop: start=0, step=1, limit=1
              $region98: #{_lambda_.2} parent=96 // loop_pre_header
                _
              $region99: #{_lambda_.2} parent=96 // loop_header
                %s769 = sphi 0, %s773
                %p770 = scmp.ge.s32.totalorder %s769, 1
                %s774 = sphi %s751, %s751
                %s775 = sphi %s760, %s760
              $region100: #{_lambda_.2} parent=96 // loop_header_branch
                %772 = sbr.rel (%p770) target = $region104
              $region101: #{_lambda_.2} parent=96 // loop_body
                %v776 = vld [vmem:[%s774] sm:$0xf]
                %777 = vst [vmem:[%s775] sm:$0xf] %v776
                %v778 = vld [vmem:[%s774 + $0x4] sm:$0xf]
                %779 = vst [vmem:[%s775 + $0x4] sm:$0xf] %v778
                %v780 = vld [vmem:[%s774 + $0x8] sm:$0xf]
                %781 = vst [vmem:[%s775 + $0x80] sm:$0xf] %v780
                %v782 = vld [vmem:[%s774 + $0xc] sm:$0xf]
                %783 = vst [vmem:[%s775 + $0x84] sm:$0xf] %v782
              $region102: #{_lambda_.2} parent=96 // loop_footer
                %s773 = sadd.s32 1, %s769
              $region103: #{_lambda_.2} parent=96 // loop_footer_branch
                %768 = sbr.rel target = $region99
              $region104: #{_lambda_.2} parent=96 // loop_exit
                _
            $region97: #{_lambda_.2} parent=88 // pred_fallthru
              _
          $region89: #{_lambda_.2} parent=84 // pred_fallthru
            _
          %811 = vnop
        $region85: #{_lambda_.2} parent=68 // pred_fallthru
          _
      $region69: #{_lambda_.2} parent=5 // pred_fallthru
        _
      %p812 = scmp.le.s32.totalorder 2, %s9
      // Predicated region
      $region123: #{_lambda_.2} parent=5 // pred_check
        %p813 = pneg %p812
      $region124: #{_lambda_.2} parent=5 // pred_check_branch
        %815 = sbr.rel (%p813) target = $region126
      $region125: #{_lambda_.2} parent=5 // pred_region
        %s816 = ssub.s32 %s9, 2
        // Predicated region
        $region127: #{_lambda_.2} parent=125 // pred_check
          %p817 = pneg %p136
        $region128: #{_lambda_.2} parent=125 // pred_check_branch
          %819 = sbr.rel (%p817) target = $region130
        $region129: #{_lambda_.2} parent=125 // pred_region
          %s820 = sand.u32 %s121, 1
          %s821 = sand.u32 %s121, 1
          %s822 = smul.addr %s821, 16
          %s823 = scalar_lea.vmem [#allocation4], %s822
        $region130: #{_lambda_.2} parent=125 // pred_fallthru
          _
      $region126: #{_lambda_.2} parent=5 // pred_fallthru
        _
    $region6: #{_lambda_.2} parent=1 // loop_footer
      %s13 = sadd.s32 1, %s9
    $region7: #{_lambda_.2} parent=1 // loop_footer_branch
      %8 = sbr.rel target = $region3
    $region8: #{_lambda_.2} parent=1 // loop_exit
      _

// kernel: _lambda_.3
$region0: #{_lambda_.3}
  #allocation0 [shape = 'u32[]', space=smem, size = 0x4, offset = 0x4, fixed_abs, tag = 'smem constant byte address 0x4 - core index']
  #allocation1 [shape = 'u32[144,128]{1,0:T(1,128)}', space=vmem, size = 0x12000, scoped, tag = 'internal scratch']
  #allocation2 [shape = 'f32[2,16,8]{2,1,0:T(8,128)}', space=vmem, size = 0x4000, scoped, tag = 'scratch operand']
  %s0 = inlined_call_operand.vmem [shape: bf16[2,18,18,8], index: 0, kind: input, shape index: {}]
  %s1 = inlined_call_operand.vmem [shape: bf16[3,3,8,8], index: 1, kind: input, shape index: {}]
  %s2 = inlined_call_operand.vmem [shape: f32[1,8], index: 2, kind: input, shape index: {}]
  %s3 = inlined_call_operand.vmem [shape: bf16[2,16,16,4], index: 3, kind: input, shape index: {}]
  %s4 = inlined_call_operand.vmem [shape: bf16[4,8], index: 4, kind: input, shape index: {}]
  %s5 = inlined_call_operand.vmem [shape: f32[1,8], index: 5, kind: input, shape index: {}]
  %s6 = inlined_call_operand.vmem [shape: f32[2,16,16,8], index: 6, kind: output, shape index: {}]
  %s7 = sld [smem:[#allocation0]]
  $region181: #{_lambda_.3} parent=0
    _
  %s9 = ssub.s32 1, %s7
  %s10 = scalar_select 0, %s9, %s7
  $region1: #{_lambda_.3} parent=0
    #allocation3 [shape = 'u8[24576]{0}', space=vmem, size = 0x6000, scoped, tag = 'input window, operand 0']
    #allocation4 [shape = 'u8[16384]{0}', space=vmem, size = 0x4000, scoped, tag = 'input window, operand 3']
    #allocation5 [shape = 'u8[32768]{0}', space=vmem, size = 0x8000, scoped, tag = 'output window, operand 0']
    loop: start=0, step=1, limit=50
    $region2: #{_lambda_.3} parent=1 // loop_pre_header
      _
    $region3: #{_lambda_.3} parent=1 // loop_header
      %s12 = sphi 0, %s16
      %p13 = scmp.ge.s32.totalorder %s12, 50
      %s19 = sphi 0, %s38
      %s20 = sphi 0, %s34
      %s21 = sphi 0, %s30
      %s22 = sphi 0, %s19
      %s23 = sphi 0, %s20
      %s24 = sphi 0, %s21
      %s25 = sphi 0, %s22
      %s26 = sphi 0, %s23
      %s27 = sphi 0, %s24
      %s45 = sphi 0, %s47
      %s48 = sphi 0, %s45
      %s49 = sphi 0, %s48
      %s65 = sphi 0, %s49
      %s71 = sphi 0, %s73
      %s74 = sphi 0, %s71
      %s75 = sphi 0, %s74
      %s91 = sphi 0, %s75
      %s95 = sphi 0, %s95
      %s97 = sphi 0, %s95
      %s98 = sphi 0, %s97
      %s112 = sphi 0, %s98
      %s120 = sphi 0, %s122
      %s123 = sphi 0, %s120
      %s124 = sphi 0, %s123
      %s140 = sphi 0, %s124
      %s144 = sphi 0, %s144
      %s146 = sphi 0, %s144
      %s147 = sphi 0, %s146
      %s161 = sphi 0, %s147
      %s165 = sphi 0, %s165
      %s167 = sphi 0, %s165
      %s168 = sphi 0, %s167
      %s182 = sphi 0, %s168
      %s190 = sphi 0, %s192
      %s193 = sphi 0, %s190
      %s194 = sphi 0, %s193
      %s210 = sphi 0, %s194
    $region4: #{_lambda_.3} parent=1 // loop_header_branch
      %15 = sbr.rel (%p13) target = $region8
    $region5: #{_lambda_.3} parent=1 // loop_body
      %s17 = ssub.s32 %s12, 1
      %s18 = ssub.s32 %s12, 2
      %s28 = sadd.s32 1, %s21
      %p29 = scmp.ge.s32.totalorder %s28, 3
      %s30 = scalar_select %p29, 0, %s28
      %s31 = sadd.s32 1, %s20
      %s32 = scalar_select %p29, %s31, %s20
      %p33 = scmp.ge.s32.totalorder %s32, 16
      %s34 = scalar_select %p33, 0, %s32
      %s35 = sadd.s32 1, %s19
      %s36 = scalar_select %p33, %s35, %s19
      %p37 = scmp.ge.s32.totalorder %s36, 1
      %s38 = scalar_select %p37, 0, %s36
      %s39 = sadd.s32 %s20, %s21
      %s40 = sadd.s32 %s34, %s30
      %s41 = ssub.s32 %s19, %s38
      %s42 = ssub.s32 %s39, %s40
      %s43 = sor.u32 %s41, %s42
      %p44 = scmp.eq.s32.totalorder %s43, 0
      %s46 = sadd.s32 %s45, 1
      %s47 = scalar_select %p44, %s45, %s46
      %p50 = pneg %p44
      %p51 = scmp.eq.s32.totalorder %s12, 47
      %p52 = por %p50, %p51
      %p53 = scmp.ne.s32.totalorder %s45, %s48
      %p54 = scmp.eq.s32.totalorder %s12, 0
      %p55 = por %p53, %p54
      %p56 = scmp.ne.s32.totalorder %s45, %s48
      %p57 = scmp.eq.s32.totalorder %s17, 47
      %p58 = por %p56, %p57
      %p59 = scmp.ne.s32.totalorder %s48, %s49
      %p60 = scmp.eq.s32.totalorder %s17, 0
      %p61 = por %p59, %p60
      %p62 = scmp.ne.s32.totalorder %s48, %s49
      %p63 = scmp.eq.s32.totalorder %s18, 47
      %p64 = por %p62, %p63
      %p66 = scmp.ne.s32.totalorder %s49, %s65
      %p67 = scmp.eq.s32.totalorder %s18, 0
      %p68 = por %p66, %p67
      %s69 = ssub.s32 %s21, %s30
      %p70 = scmp.eq.s32.totalorder %s69, 0
      %s72 = sadd.s32 %s71, 1
      %s73 = scalar_select %p70, %s71, %s72
      %p76 = pneg %p70
      %p77 = scmp.eq.s32.totalorder %s12, 47
      %p78 = por %p76, %p77
      %p79 = scmp.ne.s32.totalorder %s71, %s74
      %p80 = scmp.eq.s32.totalorder %s12, 0
      %p81 = por %p79, %p80
      %p82 = scmp.ne.s32.totalorder %s71, %s74
      %p83 = scmp.eq.s32.totalorder %s17, 47
      %p84 = por %p82, %p83
      %p85 = scmp.ne.s32.totalorder %s74, %s75
      %p86 = scmp.eq.s32.totalorder %s17, 0
      %p87 = por %p85, %p86
      %p88 = scmp.ne.s32.totalorder %s74, %s75
      %p89 = scmp.eq.s32.totalorder %s18, 47
      %p90 = por %p88, %p89
      %p92 = scmp.ne.s32.totalorder %s75, %s91
      %p93 = scmp.eq.s32.totalorder %s18, 0
      %p94 = por %p92, %p93
      %s96 = sadd.s32 %s95, 1
      %p99 = scmp.eq.s32.totalorder %s12, 47
      %p100 = scmp.ne.s32.totalorder %s95, %s97
      %p101 = scmp.eq.s32.totalorder %s12, 0
      %p102 = por %p100, %p101
      %p103 = scmp.ne.s32.totalorder %s95, %s97
      %p104 = scmp.eq.s32.totalorder %s17, 47
      %p105 = por %p103, %p104
      %p106 = scmp.ne.s32.totalorder %s97, %s98
      %p107 = scmp.eq.s32.totalorder %s17, 0
      %p108 = por %p106, %p107
      %p109 = scmp.ne.s32.totalorder %s97, %s98
      %p110 = scmp.eq.s32.totalorder %s18, 47
      %p111 = por %p109, %p110
      %p113 = scmp.ne.s32.totalorder %s98, %s112
      %p114 = scmp.eq.s32.totalorder %s18, 0
      %p115 = por %p113, %p114
      %s116 = ssub.s32 %s19, %s38
      %s117 = ssub.s32 %s20, %s34
      %s118 = sor.u32 %s116, %s117
      %p119 = scmp.eq.s32.totalorder %s118, 0
      %s121 = sadd.s32 %s120, 1
      %s122 = scalar_select %p119, %s120, %s121
      %p125 = pneg %p119
      %p126 = scmp.eq.s32.totalorder %s12, 47
      %p127 = por %p125, %p126
      %p128 = scmp.ne.s32.totalorder %s120, %s123
      %p129 = scmp.eq.s32.totalorder %s12, 0
      %p130 = por %p128, %p129
      %p131 = scmp.ne.s32.totalorder %s120, %s123
      %p132 = scmp.eq.s32.totalorder %s17, 47
      %p133 = por %p131, %p132
      %p134 = scmp.ne.s32.totalorder %s123, %s124
      %p135 = scmp.eq.s32.totalorder %s17, 0
      %p136 = por %p134, %p135
      %p137 = scmp.ne.s32.totalorder %s123, %s124
      %p138 = scmp.eq.s32.totalorder %s18, 47
      %p139 = por %p137, %p138
      %p141 = scmp.ne.s32.totalorder %s124, %s140
      %p142 = scmp.eq.s32.totalorder %s18, 0
      %p143 = por %p141, %p142
      %s145 = sadd.s32 %s144, 1
      %p148 = scmp.eq.s32.totalorder %s12, 47
      %p149 = scmp.ne.s32.totalorder %s144, %s146
      %p150 = scmp.eq.s32.totalorder %s12, 0
      %p151 = por %p149, %p150
      %p152 = scmp.ne.s32.totalorder %s144, %s146
      %p153 = scmp.eq.s32.totalorder %s17, 47
      %p154 = por %p152, %p153
      %p155 = scmp.ne.s32.totalorder %s146, %s147
      %p156 = scmp.eq.s32.totalorder %s17, 0
      %p157 = por %p155, %p156
      %p158 = scmp.ne.s32.totalorder %s146, %s147
      %p159 = scmp.eq.s32.totalorder %s18, 47
      %p160 = por %p158, %p159
      %p162 = scmp.ne.s32.totalorder %s147, %s161
      %p163 = scmp.eq.s32.totalorder %s18, 0
      %p164 = por %p162, %p163
      %s166 = sadd.s32 %s165, 1
      %p169 = scmp.eq.s32.totalorder %s12, 47
      %p170 = scmp.ne.s32.totalorder %s165, %s167
      %p171 = scmp.eq.s32.totalorder %s12, 0
      %p172 = por %p170, %p171
      %p173 = scmp.ne.s32.totalorder %s165, %s167
      %p174 = scmp.eq.s32.totalorder %s17, 47
      %p175 = por %p173, %p174
      %p176 = scmp.ne.s32.totalorder %s167, %s168
      %p177 = scmp.eq.s32.totalorder %s17, 0
      %p178 = por %p176, %p177
      %p179 = scmp.ne.s32.totalorder %s167, %s168
      %p180 = scmp.eq.s32.totalorder %s18, 47
      %p181 = por %p179, %p180
      %p183 = scmp.ne.s32.totalorder %s168, %s182
      %p184 = scmp.eq.s32.totalorder %s18, 0
      %p185 = por %p183, %p184
      %s186 = ssub.s32 %s19, %s38
      %s187 = ssub.s32 %s20, %s34
      %s188 = sor.u32 %s186, %s187
      %p189 = scmp.eq.s32.totalorder %s188, 0
      %s191 = sadd.s32 %s190, 1
      %s192 = scalar_select %p189, %s190, %s191
      %p195 = pneg %p189
      %p196 = scmp.eq.s32.totalorder %s12, 47
      %p197 = por %p195, %p196
      %p198 = scmp.ne.s32.totalorder %s190, %s193
      %p199 = scmp.eq.s32.totalorder %s12, 0
      %p200 = por %p198, %p199
      %p201 = scmp.ne.s32.totalorder %s190, %s193
      %p202 = scmp.eq.s32.totalorder %s17, 47
      %p203 = por %p201, %p202
      %p204 = scmp.ne.s32.totalorder %s193, %s194
      %p205 = scmp.eq.s32.totalorder %s17, 0
      %p206 = por %p204, %p205
      %p207 = scmp.ne.s32.totalorder %s193, %s194
      %p208 = scmp.eq.s32.totalorder %s18, 47
      %p209 = por %p207, %p208
      %p211 = scmp.ne.s32.totalorder %s194, %s210
      %p212 = scmp.eq.s32.totalorder %s18, 0
      %p213 = por %p211, %p212
      %p214 = scmp.le.s32.totalorder 1, %s12
      %p215 = scmp.lt.s32.totalorder %s12, 49
      %p216 = pnand %p214, %p215
      %p217 = pneg %p216
      // Predicated region
      $region9: #{_lambda_.3} parent=5 // pred_check
        _
      $region10: #{_lambda_.3} parent=5 // pred_check_branch
        %219 = sbr.rel (%p216) target = $region12
      $region11: #{_lambda_.3} parent=5 // pred_region
        %s220 = ssub.s32 %s12, 1
        // Predicated region
        $region13: #{_lambda_.3} parent=11 // pred_check
          %p221 = pneg %p108
        $region14: #{_lambda_.3} parent=11 // pred_check_branch
          %223 = sbr.rel (%p221) target = $region16
        $region15: #{_lambda_.3} parent=11 // pred_region
          _
        $region16: #{_lambda_.3} parent=11 // pred_fallthru
          _
        // Predicated region
        $region17: #{_lambda_.3} parent=11 // pred_check
          %p224 = pneg %p157
        $region18: #{_lambda_.3} parent=11 // pred_check_branch
          %226 = sbr.rel (%p224) target = $region20
        $region19: #{_lambda_.3} parent=11 // pred_region
          _
        $region20: #{_lambda_.3} parent=11 // pred_fallthru
          _
        // Predicated region
        $region21: #{_lambda_.3} parent=11 // pred_check
          %p227 = pneg %p178
        $region22: #{_lambda_.3} parent=11 // pred_check_branch
          %229 = sbr.rel (%p227) target = $region24
        $region23: #{_lambda_.3} parent=11 // pred_region
          _
        $region24: #{_lambda_.3} parent=11 // pred_fallthru
          _
      $region12: #{_lambda_.3} parent=5 // pred_fallthru
        _
      %p230 = scmp.lt.s32.totalorder %s12, 48
      // Predicated region
      $region25: #{_lambda_.3} parent=5 // pred_check
        %p231 = pneg %p230
      $region26: #{_lambda_.3} parent=5 // pred_check_branch
        %233 = sbr.rel (%p231) target = $region28
      $region27: #{_lambda_.3} parent=5 // pred_region
        // Predicated region
        $region29: #{_lambda_.3} parent=27 // pred_check
          %p234 = pneg %p55
        $region30: #{_lambda_.3} parent=27 // pred_check_branch
          %236 = sbr.rel (%p234) target = $region32
        $region31: #{_lambda_.3} parent=27 // pred_region
          %s237 = sand.u32 %s45, 1
          %s238 = sand.u32 %s45, 1
          %s239 = smul.addr %s238, 24
          %s240 = scalar_lea.vmem [#allocation3], %s239
          %s241 = sadd.s32 %s20, %s21
          %s242 = smul.u32 2, %s19
          %s243 = smul.addr %s241, 3
          %s244 = smul.addr %s242, 54
          %s245 = sadd.s32 %s243, %s244
          %s246 = smul.addr %s245, 4
          %s247 = scalar_lea.vmem %s0, %s246
          // Predicated region
          $region33: #{_lambda_.3} parent=31 // pred_check
            _
          $region34: #{_lambda_.3} parent=31 // pred_check_branch
            %249 = sbr.rel (0) target = $region36
          $region35: #{_lambda_.3} parent=31 // pred_region
            // Predicated region
            $region37: #{_lambda_.3} parent=35 // pred_check
              _
            $region38: #{_lambda_.3} parent=35 // pred_check_branch
              %251 = sbr.rel target = $region40
            $region39: #{_lambda_.3} parent=35 // pred_region
              // Predicated region
              $region52: #{_lambda_.3} parent=39 // pred_check
                _
              $region53: #{_lambda_.3} parent=39 // pred_check_branch
                %276 = sbr.rel (0) target = $region55
              $region54: #{_lambda_.3} parent=39 // pred_region
                loop: start=0, step=1, limit=1
                $region56: #{_lambda_.3} parent=54 // loop_pre_header
                  _
                $region57: #{_lambda_.3} parent=54 // loop_header
                  %s278 = sphi 0, %s282
                  %p279 = scmp.ge.s32.totalorder %s278, 1
                  %s283 = sphi %s247, %s247
                  %s284 = sphi %s240, %s240
                $region58: #{_lambda_.3} parent=54 // loop_header_branch
                  %281 = sbr.rel (%p279) target = $region62
                $region59: #{_lambda_.3} parent=54 // loop_body
                  _
                $region60: #{_lambda_.3} parent=54 // loop_footer
                  %s282 = sadd.s32 1, %s278
                $region61: #{_lambda_.3} parent=54 // loop_footer_branch
                  %277 = sbr.rel target = $region57
                $region62: #{_lambda_.3} parent=54 // loop_exit
                  _
                loop: start=0, step=1, limit=1
                $region63: #{_lambda_.3} parent=54 // loop_pre_header
                  _
                $region64: #{_lambda_.3} parent=54 // loop_header
                  %s287 = sphi 0, %s291
                  %p288 = scmp.ge.s32.totalorder %s287, 1
                  %s292 = sphi %s247, %s247
                  %s293 = sphi %s240, %s240
                $region65: #{_lambda_.3} parent=54 // loop_header_branch
                  %290 = sbr.rel (%p288) target = $region69
                $region66: #{_lambda_.3} parent=54 // loop_body
                  %v294 = vld [vmem:[%s292] sm:$0xf]
                  %295 = vst [vmem:[%s293] sm:$0xf] %v294
                  %v296 = vld [vmem:[%s292 + $0x4] sm:$0xf]
                  %297 = vst [vmem:[%s293 + $0x4] sm:$0xf] %v296
                  %v298 = vld [vmem:[%s292 + $0x8] sm:$0xf]
                  %299 = vst [vmem:[%s293 + $0x8] sm:$0xf] %v298
                  %v300 = vld [vmem:[%s292 + $0xd8] sm:$0xf]
                  %301 = vst [vmem:[%s293 + $0xc] sm:$0xf] %v300
                  %v302 = vld [vmem:[%s292 + $0xdc] sm:$0xf]
                  %303 = vst [vmem:[%s293 + $0x10] sm:$0xf] %v302
                  %v304 = vld [vmem:[%s292 + $0xe0] sm:$0xf]
                  %305 = vst [vmem:[%s293 + $0x14] sm:$0xf] %v304
                $region67: #{_lambda_.3} parent=54 // loop_footer
                  %s291 = sadd.s32 1, %s287
                $region68: #{_lambda_.3} parent=54 // loop_footer_branch
                  %286 = sbr.rel target = $region64
                $region69: #{_lambda_.3} parent=54 // loop_exit
                  _
              $region55: #{_lambda_.3} parent=39 // pred_fallthru
                _
            $region40: #{_lambda_.3} parent=35 // pred_fallthru
              _
            // Predicated region
            $region41: #{_lambda_.3} parent=35 // pred_check
              _
            $region42: #{_lambda_.3} parent=35 // pred_check_branch
              %253 = sbr.rel (0) target = $region44
            $region43: #{_lambda_.3} parent=35 // pred_region
              loop: start=0, step=1, limit=1
              $region45: #{_lambda_.3} parent=43 // loop_pre_header
                _
              $region46: #{_lambda_.3} parent=43 // loop_header
                %s256 = sphi 0, %s260
                %p257 = scmp.ge.s32.totalorder %s256, 1
                %s261 = sphi %s247, %s247
                %s262 = sphi %s240, %s240
              $region47: #{_lambda_.3} parent=43 // loop_header_branch
                %259 = sbr.rel (%p257) target = $region51
              $region48: #{_lambda_.3} parent=43 // loop_body
                %v263 = vld [vmem:[%s261] sm:$0xf]
                %264 = vst [vmem:[%s262] sm:$0xf] %v263
                %v265 = vld [vmem:[%s261 + $0x4] sm:$0xf]
                %266 = vst [vmem:[%s262 + $0x4] sm:$0xf] %v265
                %v267 = vld [vmem:[%s261 + $0x8] sm:$0xf]
                %268 = vst [vmem:[%s262 + $0x8] sm:$0xf] %v267
                %v269 = vld [vmem:[%s261 + $0xd8] sm:$0xf]
                %270 = vst [vmem:[%s262 + $0xc] sm:$0xf] %v269
                %v271 = vld [vmem:[%s261 + $0xdc] sm:$0xf]
                %272 = vst [vmem:[%s262 + $0x10] sm:$0xf] %v271
                %v273 = vld [vmem:[%s261 + $0xe0] sm:$0xf]
                %274 = vst [vmem:[%s262 + $0x14] sm:$0xf] %v273
              $region49: #{_lambda_.3} parent=43 // loop_footer
                %s260 = sadd.s32 1, %s256
              $region50: #{_lambda_.3} parent=43 // loop_footer_branch
                %255 = sbr.rel target = $region46
              $region51: #{_lambda_.3} parent=43 // loop_exit
                _
            $region44: #{_lambda_.3} parent=35 // pred_fallthru
              _
          $region36: #{_lambda_.3} parent=31 // pred_fallthru
            _
          %306 = vnop
        $region32: #{_lambda_.3} parent=27 // pred_fallthru
          _
        // Predicated region
        $region70: #{_lambda_.3} parent=27 // pred_check
          %p307 = pneg %p81
        $region71: #{_lambda_.3} parent=27 // pred_check_branch
          %309 = sbr.rel (%p307) target = $region73
        $region72: #{_lambda_.3} parent=27 // pred_region
          %p310 = scmp.lt.s32.totalorder %s21, 2
          %s311 = scalar_select %p310, %s21, 2
          %s312 = smul.addr %s311, 3
          %s313 = smul.addr %s312, 4
          %s314 = scalar_lea.vmem %s1, %s313
        $region73: #{_lambda_.3} parent=27 // pred_fallthru
          _
        // Predicated region
        $region74: #{_lambda_.3} parent=27 // pred_check
          %p315 = pneg %p130
        $region75: #{_lambda_.3} parent=27 // pred_check_branch
          %317 = sbr.rel (%p315) target = $region77
        $region76: #{_lambda_.3} parent=27 // pred_region
          %s318 = sand.u32 %s120, 1
          %s319 = sand.u32 %s120, 1
          %s320 = smul.addr %s319, 16
          %s321 = scalar_lea.vmem [#allocation4], %s320
          %s322 = smul.u32 2, %s19
          %s323 = smul.addr %s20, 2
          %s324 = smul.addr %s322, 32
          %s325 = sadd.s32 %s323, %s324
          %s326 = smul.addr %s325, 4
          %s327 = scalar_lea.vmem %s3, %s326
          // Predicated region
          $region78: #{_lambda_.3} parent=76 // pred_check
            _
          $region79: #{_lambda_.3} parent=76 // pred_check_branch
            %329 = sbr.rel (0) target = $region81
          $region80: #{_lambda_.3} parent=76 // pred_region
            // Predicated region
            $region82: #{_lambda_.3} parent=80 // pred_check
              _
            $region83: #{_lambda_.3} parent=80 // pred_check_branch
              %331 = sbr.rel target = $region85
            $region84: #{_lambda_.3} parent=80 // pred_region
              // Predicated region
              $region97: #{_lambda_.3} parent=84 // pred_check
                _
              $region98: #{_lambda_.3} parent=84 // pred_check_branch
                %352 = sbr.rel (0) target = $region100
              $region99: #{_lambda_.3} parent=84 // pred_region
                loop: start=0, step=1, limit=1
                $region101: #{_lambda_.3} parent=99 // loop_pre_header
                  _
                $region102: #{_lambda_.3} parent=99 // loop_header
                  %s354 = sphi 0, %s358
                  %p355 = scmp.ge.s32.totalorder %s354, 1
                  %s359 = sphi %s327, %s327
                  %s360 = sphi %s321, %s321
                $region103: #{_lambda_.3} parent=99 // loop_header_branch
                  %357 = sbr.rel (%p355) target = $region107
                $region104: #{_lambda_.3} parent=99 // loop_body
                  _
                $region105: #{_lambda_.3} parent=99 // loop_footer
                  %s358 = sadd.s32 1, %s354
                $region106: #{_lambda_.3} parent=99 // loop_footer_branch
                  %353 = sbr.rel target = $region102
                $region107: #{_lambda_.3} parent=99 // loop_exit
                  _
                loop: start=0, step=1, limit=1
                $region108: #{_lambda_.3} parent=99 // loop_pre_header
                  _
                $region109: #{_lambda_.3} parent=99 // loop_header
                  %s363 = sphi 0, %s367
                  %p364 = scmp.ge.s32.totalorder %s363, 1
                  %s368 = sphi %s327, %s327
                  %s369 = sphi %s321, %s321
                $region110: #{_lambda_.3} parent=99 // loop_header_branch
                  %366 = sbr.rel (%p364) target = $region114
                $region111: #{_lambda_.3} parent=99 // loop_body
                  %v370 = vld [vmem:[%s368] sm:$0xf]
                  %371 = vst [vmem:[%s369] sm:$0xf] %v370
                  %v372 = vld [vmem:[%s368 + $0x4] sm:$0xf]
                  %373 = vst [vmem:[%s369 + $0x4] sm:$0xf] %v372
                  %v374 = vld [vmem:[%s368 + $0x80] sm:$0xf]
                  %375 = vst [vmem:[%s369 + $0x8] sm:$0xf] %v374
                  %v376 = vld [vmem:[%s368 + $0x84] sm:$0xf]
                  %377 = vst [vmem:[%s369 + $0xc] sm:$0xf] %v376
                $region112: #{_lambda_.3} parent=99 // loop_footer
                  %s367 = sadd.s32 1, %s363
                $region113: #{_lambda_.3} parent=99 // loop_footer_branch
                  %362 = sbr.rel target = $region109
                $region114: #{_lambda_.3} parent=99 // loop_exit
                  _
              $region100: #{_lambda_.3} parent=84 // pred_fallthru
                _
            $region85: #{_lambda_.3} parent=80 // pred_fallthru
              _
            // Predicated region
            $region86: #{_lambda_.3} parent=80 // pred_check
              _
            $region87: #{_lambda_.3} parent=80 // pred_check_branch
              %333 = sbr.rel (0) target = $region89
            $region88: #{_lambda_.3} parent=80 // pred_region
              loop: start=0, step=1, limit=1
              $region90: #{_lambda_.3} parent=88 // loop_pre_header
                _
              $region91: #{_lambda_.3} parent=88 // loop_header
                %s336 = sphi 0, %s340
                %p337 = scmp.ge.s32.totalorder %s336, 1
                %s341 = sphi %s327, %s327
                %s342 = sphi %s321, %s321
              $region92: #{_lambda_.3} parent=88 // loop_header_branch
                %339 = sbr.rel (%p337) target = $region96
              $region93: #{_lambda_.3} parent=88 // loop_body
                %v343 = vld [vmem:[%s341] sm:$0xf]
                %344 = vst [vmem:[%s342] sm:$0xf] %v343
                %v345 = vld [vmem:[%s341 + $0x4] sm:$0xf]
                %346 = vst [vmem:[%s342 + $0x4] sm:$0xf] %v345
                %v347 = vld [vmem:[%s341 + $0x80] sm:$0xf]
                %348 = vst [vmem:[%s342 + $0x8] sm:$0xf] %v347
                %v349 = vld [vmem:[%s341 + $0x84] sm:$0xf]
                %350 = vst [vmem:[%s342 + $0xc] sm:$0xf] %v349
              $region94: #{_lambda_.3} parent=88 // loop_footer
                %s340 = sadd.s32 1, %s336
              $region95: #{_lambda_.3} parent=88 // loop_footer_branch
                %335 = sbr.rel target = $region91
              $region96: #{_lambda_.3} parent=88 // loop_exit
                _
            $region89: #{_lambda_.3} parent=80 // pred_fallthru
              _
          $region81: #{_lambda_.3} parent=76 // pred_fallthru
            _
          %378 = vnop
        $region77: #{_lambda_.3} parent=27 // pred_fallthru
          _
      $region28: #{_lambda_.3} parent=5 // pred_fallthru
        _
      %p379 = scmp.le.s32.totalorder 1, %s12
      %p380 = scmp.lt.s32.totalorder %s12, 49
      %p381 = pnand %p379, %p380
      %p382 = pneg %p381
      // Predicated region
      $region115: #{_lambda_.3} parent=5 // pred_check
        _
      $region116: #{_lambda_.3} parent=5 // pred_check_branch
        %384 = sbr.rel (%p381) target = $region118
      $region117: #{_lambda_.3} parent=5 // pred_region
        %s385 = ssub.s32 %s12, 1
        %s386 = sand.u32 %s48, 1
        %s387 = sand.u32 %s48, 1
        %s388 = smul.addr %s387, 24
        %s389 = scalar_lea.vmem [#allocation3], %s388
        // Predicated region
        $region119: #{_lambda_.3} parent=117 // pred_check
          %p390 = pneg %p61
        $region120: #{_lambda_.3} parent=117 // pred_check_branch
          %392 = sbr.rel (%p390) target = $region122
        $region121: #{_lambda_.3} parent=117 // pred_region
          _
        $region122: #{_lambda_.3} parent=117 // pred_fallthru
          _
        %s393 = sand.u32 %s123, 1
        %s394 = sand.u32 %s123, 1
        %s395 = smul.addr %s394, 16
        %s396 = scalar_lea.vmem [#allocation4], %s395
        // Predicated region
        $region123: #{_lambda_.3} parent=117 // pred_check
          %p397 = pneg %p136
        $region124: #{_lambda_.3} parent=117 // pred_check_branch
          %399 = sbr.rel (%p397) target = $region126
        $region125: #{_lambda_.3} parent=117 // pred_region
          _
        $region126: #{_lambda_.3} parent=117 // pred_fallthru
          _
        %s400 = sand.u32 %s48, 1
        %s401 = sand.u32 %s48, 1
        %s402 = smul.addr %s401, 24
        %s403 = scalar_lea.vmem [#allocation3], %s402
        %p404 = pneg %p61
        %p405 = pneg %p58
        %p406 = scmp.lt.s32.totalorder %s24, 2
        %s407 = scalar_select %p406, %s24, 2
        %s408 = smul.addr %s407, 3
        %s409 = smul.addr %s408, 4
        %s410 = scalar_lea.vmem %s1, %s409
        %p411 = pneg %p87
        %p412 = pneg %p84
        %p413 = pneg %p108
        %p414 = pneg %p105
        %s415 = sand.u32 %s123, 1
        %s416 = sand.u32 %s123, 1
        %s417 = smul.addr %s416, 16
        %s418 = scalar_lea.vmem [#allocation4], %s417
        %p419 = pneg %p136
        %p420 = pneg %p133
        %p421 = pneg %p157
        %p422 = pneg %p154
        %p423 = pneg %p178
        %p424 = pneg %p175
        %p425 = pneg %p206
        %p426 = pneg %p203
        %s427 = sand.u32 %s193, 1
        %s428 = sand.u32 %s193, 1
        %s429 = smul.addr %s428, 32
        %s430 = scalar_lea.vmem [#allocation5], %s429
        %s431 = sadd.s32 %s23, %s24
        %s432 = smul.u32 2, %s22
        %p433 = scmp.lt.s32.totalorder %s24, 2
        %s434 = scalar_select %p433, %s24, 2
        %s435 = smul.addr %s434, 3
        %s436 = smul.addr %s435, 4
        %s437 = scalar_lea.vmem %s1, %s436
        %s438 = smul.u32 2, %s22
        %s439 = smul.u32 2, %s22
        %p441 = scmp.eq.s32.totalorder %s24, 0
        // Predicated region
        $region127: #{_lambda_.3} parent=117 // pred_check
          %p442 = pneg %p441
        $region128: #{_lambda_.3} parent=117 // pred_check_branch
          %444 = sbr.rel (%p442) target = $region130
        $region129: #{_lambda_.3} parent=117 // pred_region
          %vm445 = vcmask 64512
          %446 = vst.msk [vmem:[#allocation2] sm:$0xff] %vm445, 0.0
          %447 = vst.msk [vmem:[#allocation2 + $0x8] sm:$0xff] %vm445, 0.0
          %448 = vst.msk [vmem:[#allocation2 + $0x10] sm:$0xff] %vm445, 0.0
          %449 = vst.msk [vmem:[#allocation2 + $0x18] sm:$0xff] %vm445, 0.0
        $region130: #{_lambda_.3} parent=117 // pred_fallthru
          _
        %v450 = vld [vmem:[%s389] sm:$0xf]
        %v451 = vld [vmem:[%s389 + $0x4] sm:$0xf]
        %v452 = vld [vmem:[%s389 + $0x8] sm:$0x1]
        %v453 = vld [vmem:[%s389 + $0xc] sm:$0xf]
        %v454 = vld [vmem:[%s389 + $0x10] sm:$0xf]
        %v455 = vld [vmem:[%s389 + $0x14] sm:$0x1]
        %v456 = vld [vmem:[%s437] sm:$0xf]
        %v457 = vld [vmem:[%s437 + $0x4] sm:$0xf]
        %v458 = vld [vmem:[%s437 + $0x8] sm:$0xf]
        %v462 = vunpack.c.l.b16 %v450
        %v463 = vunpack.c.l.b16 %v451
        %v464 = vunpack.c.l.b16 %v452
        %v465 = vpack.c.b16 %v463, %v462
        %v466 = vpack.c.b16 %v464, %v464
        %vm467 = vcmask 64512
        %v469 = vsel %vm467, %v465, 0
        %v472 = vsel %vm467, %v466, 0
        %vm474 = vcmask 1043456
        %v476 = vsel %vm474, %v456, 0
        %478 = vmatprep.subr.bf16.mxu0 0
        %479 = vmatpush1.bf16.msra.mxu0 %v476
        %480 = vmatprep.subr.bf16.mxu0 0
        %481 = vmatpush1.bf16.msra.mxu0 0
        %482 = vmatprep.subr.bf16.mxu0 0
        %483 = vmatpush1.bf16.msra.mxu0 0
        %484 = vmatprep.subr.bf16.mxu0 0
        %485 = vmatpush1.bf16.msra.mxu0 0
        %486 = vmatprep.subr.bf16.mxu0 0
        %487 = vmatpush1.bf16.msra.mxu0 0
        %488 = vmatprep.subr.bf16.mxu0 0
        %489 = vmatpush1.bf16.msra.mxu0 0
        %490 = vmatprep.subr.bf16.mxu0 0
        %491 = vmatpush1.bf16.msra.mxu0 0
        %492 = vmatprep.subr.bf16.mxu0 0
        %493 = vmatpush1.bf16.msra.mxu0 0
        %494 = vmatprep.subr.bf16.mxu0 0
        %495 = vmatpush1.bf16.msra.mxu0 0
        %496 = vmatprep.subr.bf16.mxu0 0
        %497 = vmatpush1.bf16.msra.mxu0 0
        %498 = vmatprep.subr.bf16.mxu0 0
        %499 = vmatpush1.bf16.msra.mxu0 0
        %500 = vmatprep.subr.bf16.mxu0 0
        %501 = vmatpush1.bf16.msra.mxu0 0
        %502 = vmatprep.subr.bf16.mxu0 0
        %503 = vmatpush1.bf16.msra.mxu0 0
        %504 = vmatprep.subr.bf16.mxu0 0
        %505 = vmatpush1.bf16.msra.mxu0 0
        %506 = vmatprep.subr.bf16.mxu0 0
        %507 = vmatpush1.bf16.msra.mxu0 0
        %508 = vmatprep.subr.bf16.mxu0 0
        %509 = vmatpush1.bf16.msra.mxu0 0
        %510 = vmatprep.mubr.bf16.mxu0 0
        %511 = vmatmul.mubr.bf16.gmra.mrb[0].mxu0 %v469
        %v512 = vpop.f32.mrb[0].mxu0
        %v513 = vadd.f32 0.0, %v512
        %v514 = vpop.f32.mrb[0].mxu0
        %v515 = vpop.f32.mrb[0].mxu0
        %v516 = vadd.f32 0.0, %v515
        %v517 = vpop.f32.mrb[0].mxu0
        %518 = vmatprep.mubr.bf16.mxu0 0
        %519 = vmatmul.mubr.bf16.gmra.mrb[0].mxu0 %v472
        %v520 = vpop.f32.mrb[0].mxu0
        %v521 = vpop.f32.mrb[0].mxu0
        %v522 = vpop.f32.mrb[0].mxu0
        %v523 = vpop.f32.mrb[0].mxu0
        %524 = vdwg.mxu0
        %v525 = vld [vmem:[#allocation2] sm:$0xff]
        %v526 = vld [vmem:[#allocation2 + $0x8] sm:$0xff]
        %v527 = vadd.f32 %v525, %v513
        %v528 = vadd.f32 %v526, %v516
        %529 = vst.msk [vmem:[#allocation2] sm:$0xff] %vm467, %v527
        %530 = vst.msk [vmem:[#allocation2 + $0x8] sm:$0xff] %vm467, %v528
        %v534 = vunpack.c.l.b16 %v453
        %v535 = vunpack.c.l.b16 %v454
        %v536 = vunpack.c.l.b16 %v455
        %v537 = vpack.c.b16 %v535, %v534
        %v538 = vpack.c.b16 %v536, %v536
        %v540 = vsel %vm467, %v537, 0
        %v543 = vsel %vm467, %v538, 0
        %545 = vmatprep.subr.bf16.mxu0 0
        %546 = vmatpush1.bf16.msra.mxu0 %v476
        %547 = vmatprep.subr.bf16.mxu0 0
        %548 = vmatpush1.bf16.msra.mxu0 0
        %549 = vmatprep.subr.bf16.mxu0 0
        %550 = vmatpush1.bf16.msra.mxu0 0
        %551 = vmatprep.subr.bf16.mxu0 0
        %552 = vmatpush1.bf16.msra.mxu0 0
        %553 = vmatprep.subr.bf16.mxu0 0
        %554 = vmatpush1.bf16.msra.mxu0 0
        %555 = vmatprep.subr.bf16.mxu0 0
        %556 = vmatpush1.bf16.msra.mxu0 0
        %557 = vmatprep.subr.bf16.mxu0 0
        %558 = vmatpush1.bf16.msra.mxu0 0
        %559 = vmatprep.subr.bf16.mxu0 0
        %560 = vmatpush1.bf16.msra.mxu0 0
        %561 = vmatprep.subr.bf16.mxu0 0
        %562 = vmatpush1.bf16.msra.mxu0 0
        %563 = vmatprep.subr.bf16.mxu0 0
        %564 = vmatpush1.bf16.msra.mxu0 0
        %565 = vmatprep.subr.bf16.mxu0 0
        %566 = vmatpush1.bf16.msra.mxu0 0
        %567 = vmatprep.subr.bf16.mxu0 0
        %568 = vmatpush1.bf16.msra.mxu0 0
        %569 = vmatprep.subr.bf16.mxu0 0
        %570 = vmatpush1.bf16.msra.mxu0 0
        %571 = vmatprep.subr.bf16.mxu0 0
        %572 = vmatpush1.bf16.msra.mxu0 0
        %573 = vmatprep.subr.bf16.mxu0 0
        %574 = vmatpush1.bf16.msra.mxu0 0
        %575 = vmatprep.subr.bf16.mxu0 0
        %576 = vmatpush1.bf16.msra.mxu0 0
        %577 = vmatprep.mubr.bf16.mxu0 0
        %578 = vmatmul.mubr.bf16.gmra.mrb[0].mxu0 %v540
        %v579 = vpop.f32.mrb[0].mxu0
        %v580 = vadd.f32 0.0, %v579
        %v581 = vpop.f32.mrb[0].mxu0
        %v582 = vpop.f32.mrb[0].mxu0
        %v583 = vadd.f32 0.0, %v582
        %v584 = vpop.f32.mrb[0].mxu0
        %585 = vmatprep.mubr.bf16.mxu0 0
        %586 = vmatmul.mubr.bf16.gmra.mrb[0].mxu0 %v543
        %v587 = vpop.f32.mrb[0].mxu0
        %v588 = vpop.f32.mrb[0].mxu0
        %v589 = vpop.f32.mrb[0].mxu0
        %v590 = vpop.f32.mrb[0].mxu0
        %591 = vdwg.mxu0
        %s592 = scalar_lea.vmem [#allocation2], 16
        %v593 = vld [vmem:[%s592] sm:$0xff]
        %v594 = vld [vmem:[%s592 + $0x8] sm:$0xff]
        %v595 = vadd.f32 %v593, %v580
        %v596 = vadd.f32 %v594, %v583
        %597 = vst.msk [vmem:[%s592] sm:$0xff] %vm467, %v595
        %598 = vst.msk [vmem:[%s592 + $0x8] sm:$0xff] %vm467, %v596
        %v600 = vsel %vm474, %v457, 0
        %602 = vmatprep.subr.bf16.mxu0 0
        %603 = vmatpush1.bf16.msra.mxu0 %v600
        %604 = vmatprep.subr.bf16.mxu0 0
        %605 = vmatpush1.bf16.msra.mxu0 0
        %606 = vmatprep.subr.bf16.mxu0 0
        %607 = vmatpush1.bf16.msra.mxu0 0
        %608 = vmatprep.subr.bf16.mxu0 0
        %609 = vmatpush1.bf16.msra.mxu0 0
        %610 = vmatprep.subr.bf16.mxu0 0
        %611 = vmatpush1.bf16.msra.mxu0 0
        %612 = vmatprep.subr.bf16.mxu0 0
        %613 = vmatpush1.bf16.msra.mxu0 0
        %614 = vmatprep.subr.bf16.mxu0 0
        %615 = vmatpush1.bf16.msra.mxu0 0
        %616 = vmatprep.subr.bf16.mxu0 0
        %617 = vmatpush1.bf16.msra.mxu0 0
        %618 = vmatprep.subr.bf16.mxu0 0
        %619 = vmatpush1.bf16.msra.mxu0 0
        %620 = vmatprep.subr.bf16.mxu0 0
        %621 = vmatpush1.bf16.msra.mxu0 0
        %622 = vmatprep.subr.bf16.mxu0 0
        %623 = vmatpush1.bf16.msra.mxu0 0
        %624 = vmatprep.subr.bf16.mxu0 0
        %625 = vmatpush1.bf16.msra.mxu0 0
        %626 = vmatprep.subr.bf16.mxu0 0
        %627 = vmatpush1.bf16.msra.mxu0 0
        %628 = vmatprep.subr.bf16.mxu0 0
        %629 = vmatpush1.bf16.msra.mxu0 0
        %630 = vmatprep.subr.bf16.mxu0 0
        %631 = vmatpush1.bf16.msra.mxu0 0
        %632 = vmatprep.subr.bf16.mxu0 0
        %633 = vmatpush1.bf16.msra.mxu0 0
        %634 = vmatprep.mubr.bf16.mxu0 0
        %635 = vmatmul.mubr.bf16.gmra.mrb[0].mxu0 %v469
        %v636 = vpop.f32.mrb[0].mxu0
        %v637 = vadd.f32 0.0, %v636
        %v638 = vpop.f32.mrb[0].mxu0
        %v639 = vpop.f32.mrb[0].mxu0
        %v640 = vadd.f32 0.0, %v639
        %v641 = vpop.f32.mrb[0].mxu0
        %642 = vmatprep.mubr.bf16.mxu0 0
        %643 = vmatmul.mubr.bf16.gmra.mrb[0].mxu0 %v472
        %v644 = vpop.f32.mrb[0].mxu0
        %v645 = vadd.f32 0.0, %v644
        %v646 = vpop.f32.mrb[0].mxu0
        %v647 = vpop.f32.mrb[0].mxu0
        %v648 = vpop.f32.mrb[0].mxu0
        %649 = vdwg.mxu0
        %v650 = vld [vmem:[#allocation2] sm:$0xff]
        %v651 = vld [vmem:[#allocation2 + $0x8] sm:$0xff]
        %vm655 = vcmask 1046528
        %v656 = vrot.slane %v637, 1
        %v657 = vrot.slane %v640, 1
        %v658 = vsel %vm655, %v656, %v657
        %v659 = vrot.slane %v645, 1
        %v660 = vsel %vm655, %v657, %v659
        %v663 = vadd.f32 %v650, %v658
        %v664 = vadd.f32 %v651, %v660
        %665 = vst.msk [vmem:[#allocation2] sm:$0xff] %vm467, %v663
        %666 = vst.msk [vmem:[#allocation2 + $0x8] sm:$0xff] %vm467, %v664
        %667 = vmatprep.subr.bf16.mxu0 0
        %668 = vmatpush1.bf16.msra.mxu0 %v600
        %669 = vmatprep.subr.bf16.mxu0 0
        %670 = vmatpush1.bf16.msra.mxu0 0
        %671 = vmatprep.subr.bf16.mxu0 0
        %672 = vmatpush1.bf16.msra.mxu0 0
        %673 = vmatprep.subr.bf16.mxu0 0
        %674 = vmatpush1.bf16.msra.mxu0 0
        %675 = vmatprep.subr.bf16.mxu0 0
        %676 = vmatpush1.bf16.msra.mxu0 0
        %677 = vmatprep.subr.bf16.mxu0 0
        %678 = vmatpush1.bf16.msra.mxu0 0
        %679 = vmatprep.subr.bf16.mxu0 0
        %680 = vmatpush1.bf16.msra.mxu0 0
        %681 = vmatprep.subr.bf16.mxu0 0
        %682 = vmatpush1.bf16.msra.mxu0 0
        %683 = vmatprep.subr.bf16.mxu0 0
        %684 = vmatpush1.bf16.msra.mxu0 0
        %685 = vmatprep.subr.bf16.mxu0 0
        %686 = vmatpush1.bf16.msra.mxu0 0
        %687 = vmatprep.subr.bf16.mxu0 0
        %688 = vmatpush1.bf16.msra.mxu0 0
        %689 = vmatprep.subr.bf16.mxu0 0
        %690 = vmatpush1.bf16.msra.mxu0 0
        %691 = vmatprep.subr.bf16.mxu0 0
        %692 = vmatpush1.bf16.msra.mxu0 0
        %693 = vmatprep.subr.bf16.mxu0 0
        %694 = vmatpush1.bf16.msra.mxu0 0
        %695 = vmatprep.subr.bf16.mxu0 0
        %696 = vmatpush1.bf16.msra.mxu0 0
        %697 = vmatprep.subr.bf16.mxu0 0
        %698 = vmatpush1.bf16.msra.mxu0 0
        %699 = vmatprep.mubr.bf16.mxu0 0
        %700 = vmatmul.mubr.bf16.gmra.mrb[0].mxu0 %v540
        %v701 = vpop.f32.mrb[0].mxu0
        %v702 = vadd.f32 0.0, %v701
        %v703 = vpop.f32.mrb[0].mxu0
        %v704 = vpop.f32.mrb[0].mxu0
        %v705 = vadd.f32 0.0, %v704
        %v706 = vpop.f32.mrb[0].mxu0
        %707 = vmatprep.mubr.bf16.mxu0 0
        %708 = vmatmul.mubr.bf16.gmra.mrb[0].mxu0 %v543
        %v709 = vpop.f32.mrb[0].mxu0
        %v710 = vadd.f32 0.0, %v709
        %v711 = vpop.f32.mrb[0].mxu0
        %v712 = vpop.f32.mrb[0].mxu0
        %v713 = vpop.f32.mrb[0].mxu0
        %714 = vdwg.mxu0
        %v715 = vld [vmem:[%s592] sm:$0xff]
        %v716 = vld [vmem:[%s592 + $0x8] sm:$0xff]
        %v720 = vrot.slane %v702, 1
        %v721 = vrot.slane %v705, 1
        %v722 = vsel %vm655, %v720, %v721
        %v723 = vrot.slane %v710, 1
        %v724 = vsel %vm655, %v721, %v723
        %v727 = vadd.f32 %v715, %v722
        %v728 = vadd.f32 %v716, %v724
        %729 = vst.msk [vmem:[%s592] sm:$0xff] %vm467, %v727
        %730 = vst.msk [vmem:[%s592 + $0x8] sm:$0xff] %vm467, %v728
        %v732 = vsel %vm474, %v458, 0
        %734 = vmatprep.subr.bf16.mxu0 0
        %735 = vmatpush1.bf16.msra.mxu0 %v732
        %736 = vmatprep.subr.bf16.mxu0 0
        %737 = vmatpush1.bf16.msra.mxu0 0
        %738 = vmatprep.subr.bf16.mxu0 0
        %739 = vmatpush1.bf16.msra.mxu0 0
        %740 = vmatprep.subr.bf16.mxu0 0
        %741 = vmatpush1.bf16.msra.mxu0 0
        %742 = vmatprep.subr.bf16.mxu0 0
        %743 = vmatpush1.bf16.msra.mxu0 0
        %744 = vmatprep.subr.bf16.mxu0 0
        %745 = vmatpush1.bf16.msra.mxu0 0
        %746 = vmatprep.subr.bf16.mxu0 0
        %747 = vmatpush1.bf16.msra.mxu0 0
        %748 = vmatprep.subr.bf16.mxu0 0
        %749 = vmatpush1.bf16.msra.mxu0 0
        %750 = vmatprep.subr.bf16.mxu0 0
        %751 = vmatpush1.bf16.msra.mxu0 0
        %752 = vmatprep.subr.bf16.mxu0 0
        %753 = vmatpush1.bf16.msra.mxu0 0
        %754 = vmatprep.subr.bf16.mxu0 0
        %755 = vmatpush1.bf16.msra.mxu0 0
        %756 = vmatprep.subr.bf16.mxu0 0
        %757 = vmatpush1.bf16.msra.mxu0 0
        %758 = vmatprep.subr.bf16.mxu0 0
        %759 = vmatpush1.bf16.msra.mxu0 0
        %760 = vmatprep.subr.bf16.mxu0 0
        %761 = vmatpush1.bf16.msra.mxu0 0
        %762 = vmatprep.subr.bf16.mxu0 0
        %763 = vmatpush1.bf16.msra.mxu0 0
        %764 = vmatprep.subr.bf16.mxu0 0
        %765 = vmatpush1.bf16.msra.mxu0 0
        %766 = vmatprep.mubr.bf16.mxu0 0
        %767 = vmatmul.mubr.bf16.gmra.mrb[0].mxu0 %v469
        %v768 = vpop.f32.mrb[0].mxu0
        %v769 = vadd.f32 0.0, %v768
        %v770 = vpop.f32.mrb[0].mxu0
        %v771 = vpop.f32.mrb[0].mxu0
        %v772 = vadd.f32 0.0, %v771
        %v773 = vpop.f32.mrb[0].mxu0
        %774 = vmatprep.mubr.bf16.mxu0 0
        %775 = vmatmul.mubr.bf16.gmra.mrb[0].mxu0 %v472
        %v776 = vpop.f32.mrb[0].mxu0
        %v777 = vadd.f32 0.0, %v776
        %v778 = vpop.f32.mrb[0].mxu0
        %v779 = vpop.f32.mrb[0].mxu0
        %v780 = vpop.f32.mrb[0].mxu0
        %781 = vdwg.mxu0
        %v782 = vld [vmem:[#allocation2] sm:$0xff]
        %v783 = vld [vmem:[#allocation2 + $0x8] sm:$0xff]
        %vm787 = vcmask 1045504
        %v788 = vrot.slane %v769, 2
        %v789 = vrot.slane %v772, 2
        %v790 = vsel %vm787, %v788, %v789
        %v791 = vrot.slane %v777, 2
        %v792 = vsel %vm787, %v789, %v791
        %v795 = vadd.f32 %v782, %v790
        %v796 = vadd.f32 %v783, %v792
        %797 = vst.msk [vmem:[#allocation2] sm:$0xff] %vm467, %v795
        %798 = vst.msk [vmem:[#allocation2 + $0x8] sm:$0xff] %vm467, %v796
        %799 = vmatprep.subr.bf16.mxu0 0
        %800 = vmatpush1.bf16.msra.mxu0 %v732
        %801 = vmatprep.subr.bf16.mxu0 0
        %802 = vmatpush1.bf16.msra.mxu0 0
        %803 = vmatprep.subr.bf16.mxu0 0
        %804 = vmatpush1.bf16.msra.mxu0 0
        %805 = vmatprep.subr.bf16.mxu0 0
        %806 = vmatpush1.bf16.msra.mxu0 0
        %807 = vmatprep.subr.bf16.mxu0 0
        %808 = vmatpush1.bf16.msra.mxu0 0
        %809 = vmatprep.subr.bf16.mxu0 0
        %810 = vmatpush1.bf16.msra.mxu0 0
        %811 = vmatprep.subr.bf16.mxu0 0
        %812 = vmatpush1.bf16.msra.mxu0 0
        %813 = vmatprep.subr.bf16.mxu0 0
        %814 = vmatpush1.bf16.msra.mxu0 0
        %815 = vmatprep.subr.bf16.mxu0 0
        %816 = vmatpush1.bf16.msra.mxu0 0
        %817 = vmatprep.subr.bf16.mxu0 0
        %818 = vmatpush1.bf16.msra.mxu0 0
        %819 = vmatprep.subr.bf16.mxu0 0
        %820 = vmatpush1.bf16.msra.mxu0 0
        %821 = vmatprep.subr.bf16.mxu0 0
        %822 = vmatpush1.bf16.msra.mxu0 0
        %823 = vmatprep.subr.bf16.mxu0 0
        %824 = vmatpush1.bf16.msra.mxu0 0
        %825 = vmatprep.subr.bf16.mxu0 0
        %826 = vmatpush1.bf16.msra.mxu0 0
        %827 = vmatprep.subr.bf16.mxu0 0
        %828 = vmatpush1.bf16.msra.mxu0 0
        %829 = vmatprep.subr.bf16.mxu0 0
        %830 = vmatpush1.bf16.msra.mxu0 0
        %831 = vmatprep.mubr.bf16.mxu0 0
        %832 = vmatmul.mubr.bf16.gmra.mrb[0].mxu0 %v540
        %v833 = vpop.f32.mrb[0].mxu0
        %v834 = vadd.f32 0.0, %v833
        %v835 = vpop.f32.mrb[0].mxu0
        %v836 = vpop.f32.mrb[0].mxu0
        %v837 = vadd.f32 0.0, %v836
        %v838 = vpop.f32.mrb[0].mxu0
        %839 = vmatprep.mubr.bf16.mxu0 0
        %840 = vmatmul.mubr.bf16.gmra.mrb[0].mxu0 %v543
        %v841 = vpop.f32.mrb[0].mxu0
        %v842 = vadd.f32 0.0, %v841
        %v843 = vpop.f32.mrb[0].mxu0
        %v844 = vpop.f32.mrb[0].mxu0
        %v845 = vpop.f32.mrb[0].mxu0
        %846 = vdwg.mxu0
        %v847 = vld [vmem:[%s592] sm:$0xff]
        %v848 = vld [vmem:[%s592 + $0x8] sm:$0xff]
        %v852 = vrot.slane %v834, 2
        %v853 = vrot.slane %v837, 2
        %v854 = vsel %vm787, %v852, %v853
        %v855 = vrot.slane %v842, 2
        %v856 = vsel %vm787, %v853, %v855
        %v859 = vadd.f32 %v847, %v854
        %v860 = vadd.f32 %v848, %v856
        %861 = vst.msk [vmem:[%s592] sm:$0xff] %vm467, %v859
        %862 = vst.msk [vmem:[%s592 + $0x8] sm:$0xff] %vm467, %v860
        %p863 = scmp.eq.s32.totalorder %s24, 2
        // Predicated region
        $region131: #{_lambda_.3} parent=117 // pred_check
          %p864 = pneg %p863
        $region132: #{_lambda_.3} parent=117 // pred_check_branch
          %866 = sbr.rel (%p864) target = $region134
        $region133: #{_lambda_.3} parent=117 // pred_region
          %v867 = vld [vmem:[%s2] sm:$0x1]
          %v868 = vld [vmem:[%s396] sm:$0xf]
          %v869 = vld [vmem:[%s396 + $0x4] sm:$0xf]
          %v870 = vld [vmem:[%s396 + $0x8] sm:$0xf]
          %v871 = vld [vmem:[%s396 + $0xc] sm:$0xf]
          %v872 = vld [vmem:[%s4] sm:$0x3]
          %v873 = vld [vmem:[%s5] sm:$0x1]
          %v874 = vld [vmem:[#allocation2] sm:$0xff]
          %v875 = vld [vmem:[#allocation2 + $0x8] sm:$0xff]
          %v877 = vlaneseq
          %v878 = vshrl.u32 %v877, 7
          %v879 = vsub.s32 0, %v878
          %v880 = vrot.slane %v867, %v879
          %v882 = vadd.f32 %v874, %v880
          %v883 = vadd.f32 %v875, %v880
          %v886 = vunpack.c.l.b16 %v868
          %v887 = vunpack.c.l.b16 %v869
          %v888 = vpack.c.b16 %v887, %v886
          %vm889 = vcmask 31744
          %v891 = vsel %vm889, %v888, 0
          %vm893 = vcmask 1041408
          %v895 = vsel %vm893, %v872, 0
          %897 = vmatprep.subr.bf16.mxu0 0
          %898 = vmatpush1.bf16.msra.mxu0 %v895
          %899 = vmatprep.subr.bf16.mxu0 0
          %900 = vmatpush1.bf16.msra.mxu0 0
          %901 = vmatprep.subr.bf16.mxu0 0
          %902 = vmatpush1.bf16.msra.mxu0 0
          %903 = vmatprep.subr.bf16.mxu0 0
          %904 = vmatpush1.bf16.msra.mxu0 0
          %905 = vmatprep.subr.bf16.mxu0 0
          %906 = vmatpush1.bf16.msra.mxu0 0
          %907 = vmatprep.subr.bf16.mxu0 0
          %908 = vmatpush1.bf16.msra.mxu0 0
          %909 = vmatprep.subr.bf16.mxu0 0
          %910 = vmatpush1.bf16.msra.mxu0 0
          %911 = vmatprep.subr.bf16.mxu0 0
          %912 = vmatpush1.bf16.msra.mxu0 0
          %913 = vmatprep.subr.bf16.mxu0 0
          %914 = vmatpush1.bf16.msra.mxu0 0
          %915 = vmatprep.subr.bf16.mxu0 0
          %916 = vmatpush1.bf16.msra.mxu0 0
          %917 = vmatprep.subr.bf16.mxu0 0
          %918 = vmatpush1.bf16.msra.mxu0 0
          %919 = vmatprep.subr.bf16.mxu0 0
          %920 = vmatpush1.bf16.msra.mxu0 0
          %921 = vmatprep.subr.bf16.mxu0 0
          %922 = vmatpush1.bf16.msra.mxu0 0
          %923 = vmatprep.subr.bf16.mxu0 0
          %924 = vmatpush1.bf16.msra.mxu0 0
          %925 = vmatprep.subr.bf16.mxu0 0
          %926 = vmatpush1.bf16.msra.mxu0 0
          %927 = vmatprep.subr.bf16.mxu0 0
          %928 = vmatpush1.bf16.msra.mxu0 0
          %929 = vmatprep.mubr.bf16.mxu0 0
          %930 = vmatmul.mubr.bf16.gmra.mrb[0].mxu0 %v891
          %v931 = vpop.f32.mrb[0].mxu0
          %v932 = vadd.f32 0.0, %v931
          %v933 = vpop.f32.mrb[0].mxu0
          %v934 = vpop.f32.mrb[0].mxu0
          %v935 = vadd.f32 0.0, %v934
          %v936 = vpop.f32.mrb[0].mxu0
          %937 = vdwg.mxu0
          %v938 = vadd.f32 %v882, %v932
          %v939 = vadd.f32 %v883, %v935
          %v941 = vlaneseq
          %v942 = vshrl.u32 %v941, 7
          %v943 = vsub.s32 0, %v942
          %v944 = vrot.slane %v873, %v943
          %v946 = vadd.f32 %v938, %v944
          %v947 = vadd.f32 %v939, %v944
          %v948 = vmax.f32 %v946, 0.0
          %v949 = vmax.f32 %v947, 0.0
          %950 = vst.msk [vmem:[%s430] sm:$0xff] %vm467, %v948
          %951 = vst.msk [vmem:[%s430 + $0x8] sm:$0xff] %vm467, %v949
          %v952 = vld [vmem:[%s592] sm:$0xff]
          %v953 = vld [vmem:[%s592 + $0x8] sm:$0xff]
          %v954 = vadd.f32 %v952, %v880
          %v955 = vadd.f32 %v953, %v880
          %v958 = vunpack.c.l.b16 %v870
          %v959 = vunpack.c.l.b16 %v871
          %v960 = vpack.c.b16 %v959, %v958
          %v962 = vsel %vm889, %v960, 0
          %964 = vmatprep.subr.bf16.mxu0 0
          %965 = vmatpush1.bf16.msra.mxu0 %v895
          %966 = vmatprep.subr.bf16.mxu0 0
          %967 = vmatpush1.bf16.msra.mxu0 0
          %968 = vmatprep.subr.bf16.mxu0 0
          %969 = vmatpush1.bf16.msra.mxu0 0
          %970 = vmatprep.subr.bf16.mxu0 0
          %971 = vmatpush1.bf16.msra.mxu0 0
          %972 = vmatprep.subr.bf16.mxu0 0
          %973 = vmatpush1.bf16.msra.mxu0 0
          %974 = vmatprep.subr.bf16.mxu0 0
          %975 = vmatpush1.bf16.msra.mxu0 0
          %976 = vmatprep.subr.bf16.mxu0 0
          %977 = vmatpush1.bf16.msra.mxu0 0
          %978 = vmatprep.subr.bf16.mxu0 0
          %979 = vmatpush1.bf16.msra.mxu0 0
          %980 = vmatprep.subr.bf16.mxu0 0
          %981 = vmatpush1.bf16.msra.mxu0 0
          %982 = vmatprep.subr.bf16.mxu0 0
          %983 = vmatpush1.bf16.msra.mxu0 0
          %984 = vmatprep.subr.bf16.mxu0 0
          %985 = vmatpush1.bf16.msra.mxu0 0
          %986 = vmatprep.subr.bf16.mxu0 0
          %987 = vmatpush1.bf16.msra.mxu0 0
          %988 = vmatprep.subr.bf16.mxu0 0
          %989 = vmatpush1.bf16.msra.mxu0 0
          %990 = vmatprep.subr.bf16.mxu0 0
          %991 = vmatpush1.bf16.msra.mxu0 0
          %992 = vmatprep.subr.bf16.mxu0 0
          %993 = vmatpush1.bf16.msra.mxu0 0
          %994 = vmatprep.subr.bf16.mxu0 0
          %995 = vmatpush1.bf16.msra.mxu0 0
          %996 = vmatprep.mubr.bf16.mxu0 0
          %997 = vmatmul.mubr.bf16.gmra.mrb[0].mxu0 %v962
          %v998 = vpop.f32.mrb[0].mxu0
          %v999 = vadd.f32 0.0, %v998
          %v1000 = vpop.f32.mrb[0].mxu0
          %v1001 = vpop.f32.mrb[0].mxu0
          %v1002 = vadd.f32 0.0, %v1001
          %v1003 = vpop.f32.mrb[0].mxu0
          %1004 = vdwg.mxu0
          %v1005 = vadd.f32 %v954, %v999
          %v1006 = vadd.f32 %v955, %v1002
          %v1007 = vadd.f32 %v1005, %v944
          %v1008 = vadd.f32 %v1006, %v944
          %v1009 = vmax.f32 %v1007, 0.0
          %v1010 = vmax.f32 %v1008, 0.0
          %s1011 = scalar_lea.vmem %s430, 16 [#allocation5]
          %1012 = vst.msk [vmem:[%s1011] sm:$0xff] %vm467, %v1009
          %1013 = vst.msk [vmem:[%s1011 + $0x8] sm:$0xff] %vm467, %v1010
        $region134: #{_lambda_.3} parent=117 // pred_fallthru
          _
        %s1014 = sand.u32 %s193, 1
        %s1015 = sand.u32 %s193, 1
        %s1016 = smul.addr %s1015, 32
        %s1017 = scalar_lea.vmem [#allocation5], %s1016
        // Predicated region
        $region135: #{_lambda_.3} parent=117 // pred_check
          %p1018 = pneg %p203
        $region136: #{_lambda_.3} parent=117 // pred_check_branch
          %1020 = sbr.rel (%p1018) target = $region138
        $region137: #{_lambda_.3} parent=117 // pred_region
          %s1021 = smul.u32 2, %s22
          %s1022 = smul.addr %s23, 2
          %s1023 = smul.addr %s1021, 32
          %s1024 = sadd.s32 %s1022, %s1023
          %s1025 = smul.addr %s1024, 8
          %s1026 = scalar_lea.vmem %s6, %s1025
          // Predicated region
          $region139: #{_lambda_.3} parent=137 // pred_check
            _
          $region140: #{_lambda_.3} parent=137 // pred_check_branch
            %1028 = sbr.rel (0) target = $region142
          $region141: #{_lambda_.3} parent=137 // pred_region
            // Predicated region
            $region143: #{_lambda_.3} parent=141 // pred_check
              _
            $region144: #{_lambda_.3} parent=141 // pred_check_branch
              %1030 = sbr.rel (0) target = $region146
            $region145: #{_lambda_.3} parent=141 // pred_region
              // Predicated region
              $region158: #{_lambda_.3} parent=145 // pred_check
                _
              $region159: #{_lambda_.3} parent=145 // pred_check_branch
                %1051 = sbr.rel (0) target = $region161
              $region160: #{_lambda_.3} parent=145 // pred_region
                loop: start=0, step=1, limit=1
                $region162: #{_lambda_.3} parent=160 // loop_pre_header
                  _
                $region163: #{_lambda_.3} parent=160 // loop_header
                  %s1053 = sphi 0, %s1057
                  %p1054 = scmp.ge.s32.totalorder %s1053, 1
                  %s1058 = sphi %s1017, %s1017
                  %s1059 = sphi %s1026, %s1026
                $region164: #{_lambda_.3} parent=160 // loop_header_branch
                  %1056 = sbr.rel (%p1054) target = $region168
                $region165: #{_lambda_.3} parent=160 // loop_body
                  %v1060 = vld [vmem:[%s1058] sm:$0xff]
                  %1061 = vst [vmem:[%s1059] sm:$0xff] %v1060
                  %v1062 = vld [vmem:[%s1058 + $0x8] sm:$0xff]
                  %1063 = vst [vmem:[%s1059 + $0x8] sm:$0xff] %v1062
                  %v1064 = vld [vmem:[%s1058 + $0x10] sm:$0xff]
                  %1065 = vst [vmem:[%s1059 + $0x100] sm:$0xff] %v1064
                  %v1066 = vld [vmem:[%s1058 + $0x18] sm:$0xff]
                  %1067 = vst [vmem:[%s1059 + $0x108] sm:$0xff] %v1066
                $region166: #{_lambda_.3} parent=160 // loop_footer
                  %s1057 = sadd.s32 1, %s1053
                $region167: #{_lambda_.3} parent=160 // loop_footer_branch
                  %1052 = sbr.rel target = $region163
                $region168: #{_lambda_.3} parent=160 // loop_exit
                  _
              $region161: #{_lambda_.3} parent=145 // pred_fallthru
                _
              // Predicated region
              $region169: #{_lambda_.3} parent=145 // pred_check
                _
              $region170: #{_lambda_.3} parent=145 // pred_check_branch
                %1069 = sbr.rel target = $region172
              $region171: #{_lambda_.3} parent=145 // pred_region
                _
              $region172: #{_lambda_.3} parent=145 // pred_fallthru
                _
            $region146: #{_lambda_.3} parent=141 // pred_fallthru
              _
            // Predicated region
            $region147: #{_lambda_.3} parent=141 // pred_check
              _
            $region148: #{_lambda_.3} parent=141 // pred_check_branch
              %1032 = sbr.rel target = $region150
            $region149: #{_lambda_.3} parent=141 // pred_region
              loop: start=0, step=1, limit=1
              $region151: #{_lambda_.3} parent=149 // loop_pre_header
                _
              $region152: #{_lambda_.3} parent=149 // loop_header
                %s1035 = sphi 0, %s1039
                %p1036 = scmp.ge.s32.totalorder %s1035, 1
                %s1040 = sphi %s1017, %s1017
                %s1041 = sphi %s1026, %s1026
              $region153: #{_lambda_.3} parent=149 // loop_header_branch
                %1038 = sbr.rel (%p1036) target = $region157
              $region154: #{_lambda_.3} parent=149 // loop_body
                %v1042 = vld [vmem:[%s1040] sm:$0xff]
                %1043 = vst [vmem:[%s1041] sm:$0xff] %v1042
                %v1044 = vld [vmem:[%s1040 + $0x8] sm:$0xff]
                %1045 = vst [vmem:[%s1041 + $0x8] sm:$0xff] %v1044
                %v1046 = vld [vmem:[%s1040 + $0x10] sm:$0xff]
                %1047 = vst [vmem:[%s1041 + $0x100] sm:$0xff] %v1046
                %v1048 = vld [vmem:[%s1040 + $0x18] sm:$0xff]
                %1049 = vst [vmem:[%s1041 + $0x108] sm:$0xff] %v1048
              $region155: #{_lambda_.3} parent=149 // loop_footer
                %s1039 = sadd.s32 1, %s1035
              $region156: #{_lambda_.3} parent=149 // loop_footer_branch
                %1034 = sbr.rel target = $region152
              $region157: #{_lambda_.3} parent=149 // loop_exit
                _
            $region150: #{_lambda_.3} parent=141 // pred_fallthru
              _
          $region142: #{_lambda_.3} parent=137 // pred_fallthru
            _
          %1070 = vnop
        $region138: #{_lambda_.3} parent=117 // pred_fallthru
          _
      $region118: #{_lambda_.3} parent=5 // pred_fallthru
        _
      %p1071 = scmp.le.s32.totalorder 2, %s12
      // Predicated region
      $region173: #{_lambda_.3} parent=5 // pred_check
        %p1072 = pneg %p1071
      $region174: #{_lambda_.3} parent=5 // pred_check_branch
        %1074 = sbr.rel (%p1072) target = $region176
      $region175: #{_lambda_.3} parent=5 // pred_region
        %s1075 = ssub.s32 %s12, 2
        // Predicated region
        $region177: #{_lambda_.3} parent=175 // pred_check
          %p1076 = pneg %p209
        $region178: #{_lambda_.3} parent=175 // pred_check_branch
          %1078 = sbr.rel (%p1076) target = $region180
        $region179: #{_lambda_.3} parent=175 // pred_region
          %s1079 = sand.u32 %s194, 1
          %s1080 = sand.u32 %s194, 1
          %s1081 = smul.addr %s1080, 32
          %s1082 = scalar_lea.vmem [#allocation5], %s1081
        $region180: #{_lambda_.3} parent=175 // pred_fallthru
          _
      $region176: #{_lambda_.3} parent=5 // pred_fallthru
        _
    $region6: #{_lambda_.3} parent=1 // loop_footer
      %s16 = sadd.s32 1, %s12
    $region7: #{_lambda_.3} parent=1 // loop_footer_branch
      %11 = sbr.rel target = $region3
    $region8: #{_lambda_.3} parent=1 // loop_exit
      _

</llo_original>
